<compile_context>
chip_gen: v5e
topology: v5e:2x2
jax: 0.10.0
libtpu: 0.0.40
codegen_flags: <defaults>
</compile_context>

<pallas_src>
import functools

import jax
import jax.numpy as jnp
import numpy as np
from jax.experimental import pallas as pl
from jax.experimental.pallas import tpu as pltpu


# --------------------------- in-kernel helpers ------------------------------
def _recip(x):
    # EUP approximate reciprocal + one Newton step; x is a (1, HW_t) row so
    # this is essentially free compared to the full-tile ops.
    r = pl.reciprocal(x, approx=True)
    return r * (2.0 - x * r)


def _double_softmax_axis0(x):
    # F.softmax(p, dim=1) applied twice; dim=1 == THW == axis 0 here.
    m1 = jnp.max(x, axis=0, keepdims=True)
    e1 = jnp.exp(x - m1)
    inv1 = _recip(jnp.sum(e1, axis=0, keepdims=True))
    y = e1 * inv1
    # Per-column max of y is exactly inv1 (max(e1) == exp(0) == 1), so the
    # second softmax skips its max-reduction pass; softmax is shift-invariant.
    e2 = jnp.exp(y - inv1)
    inv2 = _recip(jnp.sum(e2, axis=0, keepdims=True))
    return e2 * inv2


def _topk_softmax_axis0(p, top_k):
    # softmax_w_g_top(p, top=top_k): per output pixel (column) take the top-k
    # along THW, softmax over those k values shifted by the per-column top-1,
    # everything else exactly 0.  torch.topk + scatter_ have no direct Pallas
    # op, so we run k iterations of "find column max, mark it, mask it out",
    # accumulating the softmax numerator in-loop (exp of a (1, HW_t) row per
    # iteration instead of a full-tile exp at the end).
    # Assumes top_k <= THW.  Exact float ties are selected together in one
    # iteration (torch's tie order is unspecified anyway); the final column
    # sum keeps the normalization consistent in that case.
    neg_big = jnp.finfo(jnp.float32).min
    top1 = jnp.max(p, axis=0, keepdims=True)          # (1, HW_t)

    def body(_, carry):
        work, sel = carry
        cur_max = jnp.max(work, axis=0, keepdims=True)   # reduction pass
        exp_row = jnp.exp(cur_max - top1)                # (1, HW_t) EUP row
        hit = work == cur_max                            # compare pass
        sel = jnp.where(hit, exp_row, sel)               # select pass
        work = jnp.where(hit, neg_big, work)             # select pass
        return work, sel

    _, sel = jax.lax.fori_loop(
        0, top_k, body, (p, jnp.zeros_like(p)),
        unroll=2 if int(top_k) >= 2 else 1)

    inv = _recip(jnp.sum(sel, axis=0, keepdims=True))
    return sel * inv


# ------------------------------- kernel -------------------------------------
def _memory_kernel(mi_ref, qi_ref, mo_ref, *out_refs, top_k, store_p, cast_bf16):
    if store_p:
        p_ref, mem_ref = out_refs
    else:
        (mem_ref,) = out_refs

    mi = mi_ref[...]                       # (De, THW)  resident across h
    qi = qi_ref[...]                       # (De, HW_t) streamed
    if cast_bf16:
        mi = mi.astype(jnp.bfloat16)
        qi = qi.astype(jnp.bfloat16)

    # p = mi^T @ qi -> (THW, HW_t).  Both operands are K-major (De on the
    # sublane axis), THW stays lane-dense; f32 accumulation on the MXU.
    p = jax.lax.dot_general(
        mi, qi,
        dimension_numbers=(((0,), (0,)), ((), ())),
        preferred_element_type=jnp.float32)

    if top_k is None:
        p = _double_softmax_axis0(p)
    else:
        p = _topk_softmax_axis0(p, top_k)

    if store_p:
        p_ref[...] = p.astype(p_ref.dtype)

    # mem = mo @ p -> (Do, HW_t) on the MXU.
    mo = mo_ref[...]
    if cast_bf16 or mo.dtype == jnp.bfloat16:
        mo = mo.astype(jnp.bfloat16)
        p2 = p.astype(jnp.bfloat16)
    else:
        p2 = p
    mem_ref[...] = jnp.dot(mo, p2,
                           preferred_element_type=jnp.float32).astype(mem_ref.dtype)


# --------------------------- tiling / VMEM sizing ----------------------------
def _vmem_capacity_bytes():
    try:
        info = pltpu.get_tpu_info()
        for attr in ("vmem_capacity_bytes", "vmem_size_bytes", "vmem_bytes"):
            v = getattr(info, attr, None)
            if v:
                return int(v)
    except Exception:
        pass
    return 128 << 20


def _tile_and_vmem(HW_pad, THW, De, Do, in_bytes, p_bytes, mem_bytes,
                   store_p, tile_hw=None):
    """Pick a lane-dense HW tile that keeps VMEM bounded; size the limit."""
    cap = _vmem_capacity_bytes()
    if cap <= (64 << 20):          # v7x: 64 MiB physical VMEM per TensorCore
        budget = 30 << 20
    else:                          # v5e / v6e: 128 MiB
        budget = 88 << 20

    def est(t):
        resident = 2 * THW * (De + Do) * in_bytes                  # mi + mo (2-buf)
        stream = 2 * t * (De * in_bytes + Do * mem_bytes)          # qi + mem (2-buf)
        if store_p:
            stream += 2 * t * THW * p_bytes                        # p writeback (2-buf)
        scratch = 8 * THW * t * 4                                  # live f32 temporaries
        return resident + stream + scratch

    if tile_hw is None:
        cands = sorted(
            {c for c in (HW_pad, 4096, 2048, 1024, 512, 256, 128)
             if c == HW_pad or (c < HW_pad and HW_pad % c == 0 and c % 128 == 0)},
            reverse=True)
        tile_hw = cands[-1]
        for c in cands:
            if est(c) <= budget:
                tile_hw = c
                break
    else:
        if HW_pad % tile_hw != 0 or (tile_hw != HW_pad and tile_hw % 128 != 0):
            raise ValueError(
                "tile_hw must divide the (padded) HW and be a multiple of 128")

    need = est(tile_hw)
    vmem_limit = int(min(cap - (8 << 20), max(32 << 20, need + (6 << 20))))
    return tile_hw, vmem_limit


# ------------------------------- wrapper -------------------------------------
def memory_forward(m_in, m_out, q_in, q_out, top_k=None, *,
                   tile_hw=None, p_dtype=None, return_p=True, cast_bf16=False):
    B, De, T, H, W = m_in.shape
    Do = m_out.shape[1]
    THW, HW = T * H * W, H * W

    # Free row-major views only (mirrors the PyTorch .view()s; no transpose).
    mi = m_in.reshape(B, De, THW)                              # (B, De, THW)
    qi = q_in.reshape(B, De, HW)                               # (B, De, HW)
    mo = m_out.reshape(B, Do, THW)                             # (B, Do, THW)

    # Keep the streamed / stored lane dim a multiple of 128 (lane-dense vst).
    HW_pad = HW if HW % 128 == 0 else ((HW + 127) // 128) * 128
    if HW_pad != HW:
        qi = jnp.pad(qi, ((0, 0), (0, 0), (0, HW_pad - HW)))

    p_dtype = jnp.dtype(p_dtype) if p_dtype is not None else jnp.dtype(m_in.dtype)
    mem_dtype = jnp.dtype(m_out.dtype)
    in_bytes = jnp.dtype(m_in.dtype).itemsize

    tile_hw, vmem_limit = _tile_and_vmem(
        HW_pad, THW, De, Do, in_bytes, p_dtype.itemsize, mem_dtype.itemsize,
        store_p=return_p, tile_hw=tile_hw)
    n_h = HW_pad // tile_hw

    kernel = functools.partial(_memory_kernel, top_k=top_k,
                               store_p=return_p, cast_bf16=cast_bf16)

    out_shape = [jax.ShapeDtypeStruct((B, Do, HW_pad), mem_dtype)]
    out_specs = [pl.BlockSpec((None, Do, tile_hw), lambda b, h: (b, 0, h))]
    if return_p:
        out_shape = [jax.ShapeDtypeStruct((B, THW, HW_pad), p_dtype)] + out_shape
        out_specs = [pl.BlockSpec((None, THW, tile_hw), lambda b, h: (b, 0, h))] + out_specs

    flops = 2 * B * THW * HW_pad * (De + Do)
    transcendentals = (2 * B * THW * HW_pad if top_k is None
                       else B * HW_pad * int(top_k))
    bytes_accessed = ((mi.size + qi.size + mo.size) * in_bytes
                      + (B * THW * HW_pad * p_dtype.itemsize if return_p else 0)
                      + B * Do * HW_pad * mem_dtype.itemsize)

    # TODO(synk): on v7x with small B, pl.Buffered(1) on the resident mi/mo
    # specs would free half their double-buffer VMEM for a larger tile_hw.
    outs = pl.pallas_call(
        kernel,
        out_shape=tuple(out_shape),
        grid=(B, n_h),
        in_specs=[
            # mi / mo stay resident across the inner HW axis (index constant in h).
            pl.BlockSpec((None, De, THW), lambda b, h: (b, 0, 0)),
            pl.BlockSpec((None, De, tile_hw), lambda b, h: (b, 0, h)),
            pl.BlockSpec((None, Do, THW), lambda b, h: (b, 0, 0)),
        ],
        out_specs=tuple(out_specs),
        compiler_params=pltpu.CompilerParams(
            dimension_semantics=("parallel", "arbitrary"),
            vmem_limit_bytes=vmem_limit),
        cost_estimate=pl.CostEstimate(flops=flops,
                                      transcendentals=transcendentals,
                                      bytes_accessed=bytes_accessed),
    )(mi, qi, mo)

    if return_p:
        p, mem = outs
        p = p[:, :, :HW]
    else:
        (mem,) = outs
        p = None

    mem = mem[:, :, :HW].reshape(B, Do, H, W)
    mem_out = jnp.concatenate([mem, q_out], axis=1)
    return mem_out, p


# ---------------- pure-JAX reference (for a sanity check) -------------------
def reference_forward(m_in, m_out, q_in, q_out, top_k=None):
    B, De, T, H, W = m_in.shape
    Do = m_out.shape[1]
    THW, HW = T * H * W, H * W
    hi = jax.lax.Precision.HIGHEST
    mi = jnp.transpose(m_in.reshape(B, De, THW), (0, 2, 1))
    qi = q_in.reshape(B, De, HW)
    p = jnp.einsum("bte,beh->bth", mi, qi, precision=hi)     # (B, THW, HW)
    if top_k is None:
        p = jax.nn.softmax(p, axis=1)
        p = jax.nn.softmax(p, axis=1)
    else:
        # NOTE: the PyTorch `values - values[:, 0]` broadcast only type-checks
        # for B == 1; we implement the intended per-column top-1 subtraction.
        pt = jnp.transpose(p, (0, 2, 1))                      # (B, HW, THW)
        vals, idx = jax.lax.top_k(pt, top_k)                  # (B, HW, k)
        e = jnp.exp(vals - vals[..., :1])
        e = e / jnp.sum(e, axis=-1, keepdims=True)
        onehot = jax.nn.one_hot(idx, THW, dtype=p.dtype)      # (B, HW, k, THW)
        sparse = jnp.sum(onehot * e[..., None], axis=2)       # (B, HW, THW)
        p = jnp.transpose(sparse, (0, 2, 1))
    mo = m_out.reshape(B, Do, THW)
    mem = jnp.einsum("bdt,bth->bdh", mo, p, precision=hi).reshape(B, Do, H, W)
    return jnp.concatenate([mem, q_out], axis=1), p


if __name__ == "__main__":
    key = jax.random.PRNGKey(0)
    k1, k2, k3, k4 = jax.random.split(key, 4)
    B, De, Do, T, H, W = 2, 32, 32, 2, 16, 16
    scale = 0.25
    m_in = jax.random.normal(k1, (B, De, T, H, W), jnp.float32) * scale
    m_out = jax.random.normal(k2, (B, Do, T, H, W), jnp.float32) * scale
    q_in = jax.random.normal(k3, (B, De, H, W), jnp.float32) * scale
    q_out = jax.random.normal(k4, (B, Do, H, W), jnp.float32) * scale

    # 1/2) dense double-softmax and top-k paths at default settings.
    for top_k in (None, 4):
        mem_out, p = memory_forward(m_in, m_out, q_in, q_out, top_k=top_k)
        jax.block_until_ready((mem_out, p))
        mem_ref, p_ref = reference_forward(m_in, m_out, q_in, q_out, top_k=top_k)
        np.testing.assert_allclose(np.asarray(p), np.asarray(p_ref),
                                   atol=5e-3, rtol=5e-3)
        np.testing.assert_allclose(np.asarray(mem_out), np.asarray(mem_ref),
                                   atol=5e-3, rtol=5e-3)

    # 3) forced 2-step HW grid + bf16 affinity writeback (halves the dominant
    #    HBM store); mem is still computed from the f32 p inside the kernel.
    mem_out, p = memory_forward(m_in, m_out, q_in, q_out, top_k=4,
                                tile_hw=128, p_dtype=jnp.bfloat16)
    jax.block_until_ready((mem_out, p))
    mem_ref, p_ref = reference_forward(m_in, m_out, q_in, q_out, top_k=4)
    np.testing.assert_allclose(np.asarray(p.astype(jnp.float32)),
                               np.asarray(p_ref), atol=2e-2, rtol=2e-2)
    np.testing.assert_allclose(np.asarray(mem_out), np.asarray(mem_ref),
                               atol=5e-3, rtol=5e-3)

    # 4) skip the p writeback entirely (the HBM-write-bound lever).
    mem_out, p = memory_forward(m_in, m_out, q_in, q_out, top_k=4, return_p=False)
    jax.block_until_ready(mem_out)
    assert p is None
    np.testing.assert_allclose(np.asarray(mem_out), np.asarray(mem_ref),
                               atol=5e-3, rtol=5e-3)

    # 5) non-128-multiple H*W exercises the lane-padding path.
    H2 = W2 = 10
    m_in2 = jax.random.normal(k1, (B, De, T, H2, W2), jnp.float32) * scale
    m_out2 = jax.random.normal(k2, (B, Do, T, H2, W2), jnp.float32) * scale
    q_in2 = jax.random.normal(k3, (B, De, H2, W2), jnp.float32) * scale
    q_out2 = jax.random.normal(k4, (B, Do, H2, W2), jnp.float32) * scale
    mem_out, p = memory_forward(m_in2, m_out2, q_in2, q_out2, top_k=None)
    jax.block_until_ready((mem_out, p))
    mem_ref, p_ref = reference_forward(m_in2, m_out2, q_in2, q_out2, top_k=None)
    np.testing.assert_allclose(np.asarray(p), np.asarray(p_ref),
                               atol=5e-3, rtol=5e-3)
    np.testing.assert_allclose(np.asarray(mem_out), np.asarray(mem_ref),
                               atol=5e-3, rtol=5e-3)

    print("KERNEL_OK")
</pallas_src>

<mosaic_0001>
module attributes {stable_mosaic.version = 11 : i64} {
  func.func @_memory_kernel(%arg0: i32, %arg1: i32, %arg2: memref<1x32x512xf32, #tpu.memory_space<vmem>>, %arg3: memref<1x32x256xf32, #tpu.memory_space<vmem>>, %arg4: memref<1x32x512xf32, #tpu.memory_space<vmem>>, %arg5: memref<1x512x256xf32, #tpu.memory_space<vmem>>, %arg6: memref<1x32x256xf32, #tpu.memory_space<vmem>>) attributes {dimension_semantics = [#tpu.dimension_semantics<parallel>, #tpu.dimension_semantics<arbitrary>], iteration_bounds = array<i64: 2, 1>, scalar_prefetch = 0 : i64, scratch_operands = 0 : i64, tpu.core_type = #tpu.core_type<tc>, window_params = [{transform_indices = @transform_0, window_bounds = array<i64: 1, 32, 512>}, {transform_indices = @transform_1, window_bounds = array<i64: 1, 32, 256>}, {transform_indices = @transform_2, window_bounds = array<i64: 1, 32, 512>}, {transform_indices = @transform_3, window_bounds = array<i64: 1, 512, 256>}, {transform_indices = @transform_4, window_bounds = array<i64: 1, 32, 256>}]} {
    %c0 = arith.constant 0 : index
    %c0_0 = arith.constant 0 : index
    %c0_1 = arith.constant 0 : index
    %0 = vector.load %arg2[%c0, %c0_0, %c0_1] : memref<1x32x512xf32, #tpu.memory_space<vmem>>, vector<1x32x512xf32>
    %1 = vector.shape_cast %0 : vector<1x32x512xf32> to vector<32x512xf32>
    %c0_2 = arith.constant 0 : index
    %c0_3 = arith.constant 0 : index
    %c0_4 = arith.constant 0 : index
    %2 = vector.load %arg3[%c0_2, %c0_3, %c0_4] : memref<1x32x256xf32, #tpu.memory_space<vmem>>, vector<1x32x256xf32>
    %3 = vector.shape_cast %2 : vector<1x32x256xf32> to vector<32x256xf32>
    %cst = arith.constant dense<0.000000e+00> : vector<512x256xf32>
    %4 = tpu.matmul %1, %3, %cst {dimension_numbers = #tpu.dot_dimension_numbers<[0], [0], [1], [1], [0, 1, 1, 1], [], []>} : vector<32x512xf32>, vector<32x256xf32>, vector<512x256xf32> -> vector<512x256xf32>
    %cst_5 = arith.constant dense<0xFF800000> : vector<256xf32>
    %5 = vector.multi_reduction <maximumf>, %4, %cst_5 [0] : vector<512x256xf32> to vector<256xf32>
    %6 = vector.shape_cast %5 : vector<256xf32> to vector<1x256xf32>
    %7 = vector.broadcast %6 : vector<1x256xf32> to vector<512x256xf32>
    %8 = arith.subf %4, %7 : vector<512x256xf32>
    %9 = math.exp %8 : vector<512x256xf32>
    %cst_6 = arith.constant dense<0.000000e+00> : vector<256xf32>
    %10 = vector.multi_reduction <add>, %9, %cst_6 [0] : vector<512x256xf32> to vector<256xf32>
    %11 = vector.shape_cast %10 : vector<256xf32> to vector<1x256xf32>
    %12 = tpu.reciprocal %11 {approx = true} : vector<1x256xf32> -> vector<1x256xf32>
    %13 = arith.mulf %11, %12 : vector<1x256xf32>
    %cst_7 = arith.constant 2.000000e+00 : f32
    %14 = vector.broadcast %cst_7 : f32 to vector<1x256xf32>
    %15 = arith.subf %14, %13 : vector<1x256xf32>
    %16 = arith.mulf %12, %15 : vector<1x256xf32>
    %17 = vector.broadcast %16 : vector<1x256xf32> to vector<512x256xf32>
    %18 = arith.mulf %9, %17 : vector<512x256xf32>
    %19 = vector.broadcast %16 : vector<1x256xf32> to vector<512x256xf32>
    %20 = arith.subf %18, %19 : vector<512x256xf32>
    %21 = math.exp %20 : vector<512x256xf32>
    %cst_8 = arith.constant dense<0.000000e+00> : vector<256xf32>
    %22 = vector.multi_reduction <add>, %21, %cst_8 [0] : vector<512x256xf32> to vector<256xf32>
    %23 = vector.shape_cast %22 : vector<256xf32> to vector<1x256xf32>
    %24 = tpu.reciprocal %23 {approx = true} : vector<1x256xf32> -> vector<1x256xf32>
    %25 = arith.mulf %23, %24 : vector<1x256xf32>
    %cst_9 = arith.constant 2.000000e+00 : f32
    %26 = vector.broadcast %cst_9 : f32 to vector<1x256xf32>
    %27 = arith.subf %26, %25 : vector<1x256xf32>
    %28 = arith.mulf %24, %27 : vector<1x256xf32>
    %29 = vector.broadcast %28 : vector<1x256xf32> to vector<512x256xf32>
    %30 = arith.mulf %21, %29 : vector<512x256xf32>
    %c0_10 = arith.constant 0 : index
    %c0_11 = arith.constant 0 : index
    %c0_12 = arith.constant 0 : index
    %31 = vector.load %arg5[%c0_10, %c0_11, %c0_12] : memref<1x512x256xf32, #tpu.memory_space<vmem>>, vector<1x512x256xf32>
    %32 = vector.shape_cast %31 : vector<1x512x256xf32> to vector<512x256xf32>
    %33 = vector.shape_cast %30 : vector<512x256xf32> to vector<1x512x256xf32>
    tpu.vector_store %arg5[%c0_10, %c0_11, %c0_12], %33 {strides = array<i32>} : memref<1x512x256xf32, #tpu.memory_space<vmem>>, vector<1x512x256xf32>,
    %c0_13 = arith.constant 0 : index
    %c0_14 = arith.constant 0 : index
    %c0_15 = arith.constant 0 : index
    %34 = vector.load %arg4[%c0_13, %c0_14, %c0_15] : memref<1x32x512xf32, #tpu.memory_space<vmem>>, vector<1x32x512xf32>
    %35 = vector.shape_cast %34 : vector<1x32x512xf32> to vector<32x512xf32>
    %cst_16 = arith.constant dense<0.000000e+00> : vector<32x256xf32>
    %36 = tpu.matmul %35, %30, %cst_16 {dimension_numbers = #tpu.dot_dimension_numbers<[1], [0], [0], [1], [0, 0, 1, 1], [], []>} : vector<32x512xf32>, vector<512x256xf32>, vector<32x256xf32> -> vector<32x256xf32>
    %c0_17 = arith.constant 0 : index
    %c0_18 = arith.constant 0 : index
    %c0_19 = arith.constant 0 : index
    %37 = vector.load %arg6[%c0_17, %c0_18, %c0_19] : memref<1x32x256xf32, #tpu.memory_space<vmem>>, vector<1x32x256xf32>
    %38 = vector.shape_cast %37 : vector<1x32x256xf32> to vector<32x256xf32>
    %39 = vector.shape_cast %36 : vector<32x256xf32> to vector<1x32x256xf32>
    tpu.vector_store %arg6[%c0_17, %c0_18, %c0_19], %39 {strides = array<i32>} : memref<1x32x256xf32, #tpu.memory_space<vmem>>, vector<1x32x256xf32>,
    return
  }
  func.func @transform_0(%arg0: i32, %arg1: i32) -> (i32, i32, i32) {
    %c0_i32 = arith.constant 0 : i32
    %c0_i32_0 = arith.constant 0 : i32
    %c0_i32_1 = arith.constant 0 : i32
    return %arg0, %c0_i32, %c0_i32_0 : i32, i32, i32
  }
  func.func @transform_1(%arg0: i32, %arg1: i32) -> (i32, i32, i32) {
    %c0_i32 = arith.constant 0 : i32
    %c0_i32_0 = arith.constant 0 : i32
    return %arg0, %c0_i32, %arg1 : i32, i32, i32
  }
  func.func @transform_2(%arg0: i32, %arg1: i32) -> (i32, i32, i32) {
    %c0_i32 = arith.constant 0 : i32
    %c0_i32_0 = arith.constant 0 : i32
    %c0_i32_1 = arith.constant 0 : i32
    return %arg0, %c0_i32, %c0_i32_0 : i32, i32, i32
  }
  func.func @transform_3(%arg0: i32, %arg1: i32) -> (i32, i32, i32) {
    %c0_i32 = arith.constant 0 : i32
    %c0_i32_0 = arith.constant 0 : i32
    return %arg0, %c0_i32, %arg1 : i32, i32, i32
  }
  func.func @transform_4(%arg0: i32, %arg1: i32) -> (i32, i32, i32) {
    %c0_i32 = arith.constant 0 : i32
    %c0_i32_0 = arith.constant 0 : i32
    return %arg0, %c0_i32, %arg1 : i32, i32, i32
  }
}

</mosaic_0001>

<llo_original>
// kernel: tpu_custom_call.1
$region0: #{tpu_custom_call.1}
  #allocation0 [shape = 'u32[]', space=smem, size = 0x4, offset = 0x4, fixed_abs, tag = 'smem constant byte address 0x4 - core index']
  #allocation1 [shape = 'u32[72,128]{1,0:T(1,128)}', space=vmem, size = 0x9000, scoped, tag = 'internal scratch']
  %s0 = inlined_call_operand.hbm [shape: f32[2,32,512], index: 0, kind: input, shape index: {}]
  %s1 = inlined_call_operand.hbm [shape: f32[2,32,256], index: 1, kind: input, shape index: {}]
  %s2 = inlined_call_operand.hbm [shape: f32[2,32,512], index: 2, kind: input, shape index: {}]
  %s3 = inlined_call_operand.hbm [shape: f32[2,512,256], index: 3, kind: output, shape index: {0}]
  %s4 = inlined_call_operand.hbm [shape: f32[2,32,256], index: 4, kind: output, shape index: {1}]
  %5 = xla_tuple %s3, %s4
  %s6 = sld [smem:[#allocation0]]
  $region65: #{tpu_custom_call.1} parent=0
    _
  %s8 = ssub.s32 1, %s6
  %s9 = scalar_select 0, %s8, %s6
  $region1: #{tpu_custom_call.1} parent=0
    #allocation2 [shape = 'u8[131072]{0}', space=vmem, size = 0x20000, scoped, tag = 'input window, operand 0']
    #allocation3 [shape = 's32[2]{0}', space=sflag, size = 0x8, scoped, tag = 'scoped memory for tpu_custom_call.1']
    #allocation4 [shape = 's32[2]{0}', space=sflag, size = 0x8, scoped, tag = 'scoped memory for tpu_custom_call.1']
    #allocation5 [shape = 'u8[65536]{0}', space=vmem, size = 0x10000, scoped, tag = 'input window, operand 1']
    #allocation6 [shape = 's32[2]{0}', space=sflag, size = 0x8, scoped, tag = 'scoped memory for tpu_custom_call.1']
    #allocation7 [shape = 'u8[131072]{0}', space=vmem, size = 0x20000, scoped, tag = 'input window, operand 2']
    #allocation8 [shape = 'u8[1048576]{0}', space=vmem, size = 0x100000, scoped, tag = 'output window, operand 0']
    #allocation9 [shape = 'u8[65536]{0}', space=vmem, size = 0x10000, scoped, tag = 'output window, operand 1']
    #allocation10 [shape = 's32[2]{0}', space=sflag, size = 0x8, scoped, tag = 'scoped memory for tpu_custom_call.1']
    %10 = vsyncpa [#allocation3], 0
    %s11 = scalar_lea.sflag [#allocation3], 1
    %12 = vsyncpa %s11, 0
    %13 = vsyncpa [#allocation6], 0
    %s14 = scalar_lea.sflag [#allocation6], 1
    %15 = vsyncpa %s14, 0
    %16 = vsyncpa [#allocation4], 0
    %s17 = scalar_lea.sflag [#allocation4], 1
    %18 = vsyncpa %s17, 0
    %19 = vsyncpa [#allocation10], 0
    %s20 = scalar_lea.sflag [#allocation10], 1
    %21 = vsyncpa %s20, 0
    loop: start=0, step=1, limit=4
    $region2: #{tpu_custom_call.1} parent=1 // loop_pre_header
      _
    $region3: #{tpu_custom_call.1} parent=1 // loop_header
      %s23 = sphi 0, %s27
      %p24 = scmp.ge.s32.totalorder %s23, 4
      %s30 = sphi 0, %s42
      %s31 = sphi 0, %s38
      %s32 = sphi 0, %s30
      %s33 = sphi 0, %s31
      %s34 = sphi 0, %s32
      %s35 = sphi 0, %s33
      %s45 = sphi 0, %s47
      %s48 = sphi 0, %s45
      %s49 = sphi 0, %s48
      %s65 = sphi 0, %s49
      %s73 = sphi 0, %s75
      %s76 = sphi 0, %s73
      %s77 = sphi 0, %s76
      %s93 = sphi 0, %s77
      %s99 = sphi 0, %s101
      %s102 = sphi 0, %s99
      %s103 = sphi 0, %s102
      %s119 = sphi 0, %s103
      %s127 = sphi 0, %s129
      %s130 = sphi 0, %s127
      %s131 = sphi 0, %s130
      %s147 = sphi 0, %s131
      %s155 = sphi 0, %s157
      %s158 = sphi 0, %s155
      %s159 = sphi 0, %s158
      %s175 = sphi 0, %s159
    $region4: #{tpu_custom_call.1} parent=1 // loop_header_branch
      %26 = sbr.rel (%p24) target = $region8
    $region5: #{tpu_custom_call.1} parent=1 // loop_body
      %s28 = ssub.s32 %s23, 1
      %s29 = ssub.s32 %s23, 2
      %s36 = sadd.s32 1, %s31
      %p37 = scmp.ge.s32.totalorder %s36, 1
      %s38 = scalar_select %p37, 0, %s36
      %s39 = sadd.s32 1, %s30
      %s40 = scalar_select %p37, %s39, %s30
      %p41 = scmp.ge.s32.totalorder %s40, 2
      %s42 = scalar_select %p41, 0, %s40
      %s43 = ssub.s32 %s30, %s42
      %p44 = scmp.eq.s32.totalorder %s43, 0
      %s46 = sadd.s32 %s45, 1
      %s47 = scalar_select %p44, %s45, %s46
      %p50 = pneg %p44
      %p51 = scmp.eq.s32.totalorder %s23, 1
      %p52 = por %p50, %p51
      %p53 = scmp.ne.s32.totalorder %s45, %s48
      %p54 = scmp.eq.s32.totalorder %s23, 0
      %p55 = por %p53, %p54
      %p56 = scmp.ne.s32.totalorder %s45, %s48
      %p57 = scmp.eq.s32.totalorder %s28, 1
      %p58 = por %p56, %p57
      %p59 = scmp.ne.s32.totalorder %s48, %s49
      %p60 = scmp.eq.s32.totalorder %s28, 0
      %p61 = por %p59, %p60
      %p62 = scmp.ne.s32.totalorder %s48, %s49
      %p63 = scmp.eq.s32.totalorder %s29, 1
      %p64 = por %p62, %p63
      %p66 = scmp.ne.s32.totalorder %s49, %s65
      %p67 = scmp.eq.s32.totalorder %s29, 0
      %p68 = por %p66, %p67
      %s69 = ssub.s32 %s30, %s42
      %s70 = ssub.s32 %s31, %s38
      %s71 = sor.u32 %s69, %s70
      %p72 = scmp.eq.s32.totalorder %s71, 0
      %s74 = sadd.s32 %s73, 1
      %s75 = scalar_select %p72, %s73, %s74
      %p78 = pneg %p72
      %p79 = scmp.eq.s32.totalorder %s23, 1
      %p80 = por %p78, %p79
      %p81 = scmp.ne.s32.totalorder %s73, %s76
      %p82 = scmp.eq.s32.totalorder %s23, 0
      %p83 = por %p81, %p82
      %p84 = scmp.ne.s32.totalorder %s73, %s76
      %p85 = scmp.eq.s32.totalorder %s28, 1
      %p86 = por %p84, %p85
      %p87 = scmp.ne.s32.totalorder %s76, %s77
      %p88 = scmp.eq.s32.totalorder %s28, 0
      %p89 = por %p87, %p88
      %p90 = scmp.ne.s32.totalorder %s76, %s77
      %p91 = scmp.eq.s32.totalorder %s29, 1
      %p92 = por %p90, %p91
      %p94 = scmp.ne.s32.totalorder %s77, %s93
      %p95 = scmp.eq.s32.totalorder %s29, 0
      %p96 = por %p94, %p95
      %s97 = ssub.s32 %s30, %s42
      %p98 = scmp.eq.s32.totalorder %s97, 0
      %s100 = sadd.s32 %s99, 1
      %s101 = scalar_select %p98, %s99, %s100
      %p104 = pneg %p98
      %p105 = scmp.eq.s32.totalorder %s23, 1
      %p106 = por %p104, %p105
      %p107 = scmp.ne.s32.totalorder %s99, %s102
      %p108 = scmp.eq.s32.totalorder %s23, 0
      %p109 = por %p107, %p108
      %p110 = scmp.ne.s32.totalorder %s99, %s102
      %p111 = scmp.eq.s32.totalorder %s28, 1
      %p112 = por %p110, %p111
      %p113 = scmp.ne.s32.totalorder %s102, %s103
      %p114 = scmp.eq.s32.totalorder %s28, 0
      %p115 = por %p113, %p114
      %p116 = scmp.ne.s32.totalorder %s102, %s103
      %p117 = scmp.eq.s32.totalorder %s29, 1
      %p118 = por %p116, %p117
      %p120 = scmp.ne.s32.totalorder %s103, %s119
      %p121 = scmp.eq.s32.totalorder %s29, 0
      %p122 = por %p120, %p121
      %s123 = ssub.s32 %s30, %s42
      %s124 = ssub.s32 %s31, %s38
      %s125 = sor.u32 %s123, %s124
      %p126 = scmp.eq.s32.totalorder %s125, 0
      %s128 = sadd.s32 %s127, 1
      %s129 = scalar_select %p126, %s127, %s128
      %p132 = pneg %p126
      %p133 = scmp.eq.s32.totalorder %s23, 1
      %p134 = por %p132, %p133
      %p135 = scmp.ne.s32.totalorder %s127, %s130
      %p136 = scmp.eq.s32.totalorder %s23, 0
      %p137 = por %p135, %p136
      %p138 = scmp.ne.s32.totalorder %s127, %s130
      %p139 = scmp.eq.s32.totalorder %s28, 1
      %p140 = por %p138, %p139
      %p141 = scmp.ne.s32.totalorder %s130, %s131
      %p142 = scmp.eq.s32.totalorder %s28, 0
      %p143 = por %p141, %p142
      %p144 = scmp.ne.s32.totalorder %s130, %s131
      %p145 = scmp.eq.s32.totalorder %s29, 1
      %p146 = por %p144, %p145
      %p148 = scmp.ne.s32.totalorder %s131, %s147
      %p149 = scmp.eq.s32.totalorder %s29, 0
      %p150 = por %p148, %p149
      %s151 = ssub.s32 %s30, %s42
      %s152 = ssub.s32 %s31, %s38
      %s153 = sor.u32 %s151, %s152
      %p154 = scmp.eq.s32.totalorder %s153, 0
      %s156 = sadd.s32 %s155, 1
      %s157 = scalar_select %p154, %s155, %s156
      %p160 = pneg %p154
      %p161 = scmp.eq.s32.totalorder %s23, 1
      %p162 = por %p160, %p161
      %p163 = scmp.ne.s32.totalorder %s155, %s158
      %p164 = scmp.eq.s32.totalorder %s23, 0
      %p165 = por %p163, %p164
      %p166 = scmp.ne.s32.totalorder %s155, %s158
      %p167 = scmp.eq.s32.totalorder %s28, 1
      %p168 = por %p166, %p167
      %p169 = scmp.ne.s32.totalorder %s158, %s159
      %p170 = scmp.eq.s32.totalorder %s28, 0
      %p171 = por %p169, %p170
      %p172 = scmp.ne.s32.totalorder %s158, %s159
      %p173 = scmp.eq.s32.totalorder %s29, 1
      %p174 = por %p172, %p173
      %p176 = scmp.ne.s32.totalorder %s159, %s175
      %p177 = scmp.eq.s32.totalorder %s29, 0
      %p178 = por %p176, %p177
      %p179 = scmp.le.s32.totalorder 1, %s23
      %p180 = scmp.lt.s32.totalorder %s23, 3
      %p181 = pnand %p179, %p180
      %p182 = pneg %p181
      // Predicated region
      $region9: #{tpu_custom_call.1} parent=5 // pred_check
        _
      $region10: #{tpu_custom_call.1} parent=5 // pred_check_branch
        %184 = sbr.rel (%p181) target = $region12
      $region11: #{tpu_custom_call.1} parent=5 // pred_region
        %s185 = ssub.s32 %s23, 1
      $region12: #{tpu_custom_call.1} parent=5 // pred_fallthru
        _
      %p186 = scmp.lt.s32.totalorder %s23, 2
      // Predicated region
      $region13: #{tpu_custom_call.1} parent=5 // pred_check
        %p187 = pneg %p186
      $region14: #{tpu_custom_call.1} parent=5 // pred_check_branch
        %189 = sbr.rel (%p187) target = $region16
      $region15: #{tpu_custom_call.1} parent=5 // pred_region
        // Predicated region
        $region17: #{tpu_custom_call.1} parent=15 // pred_check
          %p190 = pneg %p55
        $region18: #{tpu_custom_call.1} parent=15 // pred_check_branch
          %192 = sbr.rel (%p190) target = $region20
        $region19: #{tpu_custom_call.1} parent=15 // pred_region
          %s193 = sand.u32 %s45, 1
          %s194 = scalar_lea.sflag [#allocation3], %s193
          %s195 = sand.u32 %s45, 1
          %s196 = smul.addr %s195, 128
          %s197 = scalar_lea.vmem [#allocation2], %s196
          %199 = vsyncadd %s194, 0
          %s200 = smul.addr %s30, 16
          %s201 = smul.addr %s200, 8
          %s202 = scalar_lea.hbm %s0, %s201
          %s203 = sshll.u32 %s202, 4
          %s204 = int_to_ptr.hbm [resolvable:$true] %s203
          %s205 = sshll.u32 %s197, 4
          %s206 = int_to_ptr.vmem [resolvable:$true] %s205
          %211 = dma.hbm_to_vmem [thread:$0]  %s204, 2048, %s206, %s194, 512, 512, 32
        $region20: #{tpu_custom_call.1} parent=15 // pred_fallthru
          _
        // Predicated region
        $region21: #{tpu_custom_call.1} parent=15 // pred_check
          %p212 = pneg %p83
        $region22: #{tpu_custom_call.1} parent=15 // pred_check_branch
          %214 = sbr.rel (%p212) target = $region24
        $region23: #{tpu_custom_call.1} parent=15 // pred_region
          %s215 = sand.u32 %s23, 1
          %s216 = scalar_lea.sflag [#allocation6], %s215
          %s217 = sand.u32 %s73, 1
          %s218 = smul.addr %s217, 64
          %s219 = scalar_lea.vmem [#allocation5], %s218
          %s220 = smul.u32 2, %s31
          %222 = vsyncadd %s216, 0
          %s223 = smul.addr %s30, 8
          %s224 = sadd.s32 %s220, %s223
          %s225 = smul.addr %s224, 8
          %s226 = scalar_lea.hbm %s1, %s225
          %s227 = sshll.u32 %s226, 4
          %s228 = int_to_ptr.hbm [resolvable:$true] %s227
          %s229 = sshll.u32 %s219, 4
          %s230 = int_to_ptr.vmem [resolvable:$true] %s229
          %235 = dma.hbm_to_vmem [thread:$0]  %s228, 1024, %s230, %s216, 256, 256, 16
        $region24: #{tpu_custom_call.1} parent=15 // pred_fallthru
          _
        // Predicated region
        $region25: #{tpu_custom_call.1} parent=15 // pred_check
          %p236 = pneg %p109
        $region26: #{tpu_custom_call.1} parent=15 // pred_check_branch
          %238 = sbr.rel (%p236) target = $region28
        $region27: #{tpu_custom_call.1} parent=15 // pred_region
          %s239 = sand.u32 %s23, 1
          %s240 = scalar_lea.sflag [#allocation6], %s239
          %s241 = sand.u32 %s99, 1
          %s242 = smul.addr %s241, 128
          %s243 = scalar_lea.vmem [#allocation7], %s242
          %245 = vsyncadd %s240, 0
          %s246 = smul.addr %s30, 16
          %s247 = smul.addr %s246, 8
          %s248 = scalar_lea.hbm %s2, %s247
          %s249 = sshll.u32 %s248, 4
          %s250 = int_to_ptr.hbm [resolvable:$true] %s249
          %s251 = sshll.u32 %s243, 4
          %s252 = int_to_ptr.vmem [resolvable:$true] %s251
          %257 = dma.hbm_to_vmem [thread:$0]  %s250, 2048, %s252, %s240, 512, 512, 32
        $region28: #{tpu_custom_call.1} parent=15 // pred_fallthru
          _
      $region16: #{tpu_custom_call.1} parent=5 // pred_fallthru
        _
      %p258 = scmp.le.s32.totalorder 1, %s23
      %p259 = scmp.lt.s32.totalorder %s23, 3
      %p260 = pnand %p258, %p259
      %p261 = pneg %p260
      // Predicated region
      $region29: #{tpu_custom_call.1} parent=5 // pred_check
        _
      $region30: #{tpu_custom_call.1} parent=5 // pred_check_branch
        %263 = sbr.rel (%p260) target = $region32
      $region31: #{tpu_custom_call.1} parent=5 // pred_region
        %s264 = ssub.s32 %s23, 1
        %s265 = sand.u32 %s48, 1
        %s266 = scalar_lea.sflag [#allocation3], %s265
        %s267 = sand.u32 %s48, 1
        %s268 = smul.addr %s267, 128
        %s269 = scalar_lea.vmem [#allocation2], %s268
        // Predicated region
        $region33: #{tpu_custom_call.1} parent=31 // pred_check
          %p270 = pneg %p61
        $region34: #{tpu_custom_call.1} parent=31 // pred_check_branch
          %272 = sbr.rel (%p270) target = $region36
        $region35: #{tpu_custom_call.1} parent=31 // pred_region
          %274 = dma.done %s266, 2048
        $region36: #{tpu_custom_call.1} parent=31 // pred_fallthru
          _
        %s275 = sand.u32 %s28, 1
        %s276 = scalar_lea.sflag [#allocation6], %s275
        %s277 = sand.u32 %s76, 1
        %s278 = smul.addr %s277, 64
        %s279 = scalar_lea.vmem [#allocation5], %s278
        // Predicated region
        $region37: #{tpu_custom_call.1} parent=31 // pred_check
          %p280 = pneg %p89
        $region38: #{tpu_custom_call.1} parent=31 // pred_check_branch
          %282 = sbr.rel (%p280) target = $region40
        $region39: #{tpu_custom_call.1} parent=31 // pred_region
          %284 = dma.done %s276, 1024
        $region40: #{tpu_custom_call.1} parent=31 // pred_fallthru
          _
        %s285 = sand.u32 %s28, 1
        %s286 = scalar_lea.sflag [#allocation6], %s285
        %s287 = sand.u32 %s102, 1
        %s288 = smul.addr %s287, 128
        %s289 = scalar_lea.vmem [#allocation7], %s288
        // Predicated region
        $region41: #{tpu_custom_call.1} parent=31 // pred_check
          %p290 = pneg %p115
        $region42: #{tpu_custom_call.1} parent=31 // pred_check_branch
          %292 = sbr.rel (%p290) target = $region44
        $region43: #{tpu_custom_call.1} parent=31 // pred_region
          %294 = dma.done %s286, 2048
        $region44: #{tpu_custom_call.1} parent=31 // pred_fallthru
          _
        %s295 = sand.u32 %s48, 1
        %s296 = scalar_lea.sflag [#allocation3], %s295
        %s297 = sand.u32 %s48, 1
        %s298 = smul.addr %s297, 128
        %s299 = scalar_lea.vmem [#allocation2], %s298
        %p300 = pneg %p61
        %p301 = pneg %p58
        %s302 = sand.u32 %s28, 1
        %s303 = scalar_lea.sflag [#allocation6], %s302
        %s304 = sand.u32 %s76, 1
        %s305 = smul.addr %s304, 64
        %s306 = scalar_lea.vmem [#allocation5], %s305
        %p307 = pneg %p89
        %p308 = pneg %p86
        %s309 = sand.u32 %s28, 1
        %s310 = scalar_lea.sflag [#allocation6], %s309
        %s311 = sand.u32 %s102, 1
        %s312 = smul.addr %s311, 128
        %s313 = scalar_lea.vmem [#allocation7], %s312
        %p314 = pneg %p115
        %p315 = pneg %p112
        %p316 = pneg %p143
        %p317 = pneg %p140
        %s318 = sand.u32 %s130, 1
        %s319 = scalar_lea.sflag [#allocation4], %s318
        %s320 = sand.u32 %s130, 1
        %s321 = smul.addr %s320, 1024
        %s322 = scalar_lea.vmem [#allocation8], %s321
        %p323 = pneg %p171
        %p324 = pneg %p168
        %s325 = sand.u32 %s158, 1
        %s326 = scalar_lea.sflag [#allocation10], %s325
        %s327 = sand.u32 %s158, 1
        %s328 = smul.addr %s327, 64
        %s329 = scalar_lea.vmem [#allocation9], %s328
        %s330 = smul.u32 2, %s33
        %s331 = smul.u32 2, %s33
        %s332 = smul.u32 2, %s33
        %v333 = vld [vmem:[%s269] sm:$0xff]
        %v334 = vld [vmem:[%s269 + $0x8] sm:$0xff]
        %v335 = vld [vmem:[%s269 + $0x10] sm:$0xff]
        %v336 = vld [vmem:[%s269 + $0x18] sm:$0xff]
        %v337 = vld [vmem:[%s269 + $0x20] sm:$0xff]
        %v338 = vld [vmem:[%s269 + $0x28] sm:$0xff]
        %v339 = vld [vmem:[%s269 + $0x30] sm:$0xff]
        %v340 = vld [vmem:[%s269 + $0x38] sm:$0xff]
        %v341 = vld [vmem:[%s269 + $0x40] sm:$0xff]
        %v342 = vld [vmem:[%s269 + $0x48] sm:$0xff]
        %v343 = vld [vmem:[%s269 + $0x50] sm:$0xff]
        %v344 = vld [vmem:[%s269 + $0x58] sm:$0xff]
        %v345 = vld [vmem:[%s269 + $0x60] sm:$0xff]
        %v346 = vld [vmem:[%s269 + $0x68] sm:$0xff]
        %v347 = vld [vmem:[%s269 + $0x70] sm:$0xff]
        %v348 = vld [vmem:[%s269 + $0x78] sm:$0xff]
        %v349 = vld [vmem:[%s279] sm:$0xff]
        %v350 = vld [vmem:[%s279 + $0x8] sm:$0xff]
        %v351 = vld [vmem:[%s279 + $0x10] sm:$0xff]
        %v352 = vld [vmem:[%s279 + $0x18] sm:$0xff]
        %v353 = vld [vmem:[%s279 + $0x20] sm:$0xff]
        %v354 = vld [vmem:[%s279 + $0x28] sm:$0xff]
        %v355 = vld [vmem:[%s279 + $0x30] sm:$0xff]
        %v356 = vld [vmem:[%s279 + $0x38] sm:$0xff]
        %357 = vxpose.xlu0.b32.start [1/16] %v333, 128
        %358 = vxpose.xlu0.b32.cont [2/16] %v337, 128
        %359 = vxpose.xlu0.b32.cont [3/16] %v341, 128
        %360 = vxpose.xlu0.b32.cont [4/16] %v345, 128
        %361 = vxpose.xlu0.b32.cont [5/16] 0.0, 128
        %362 = vxpose.xlu0.b32.cont [6/16] 0.0, 128
        %363 = vxpose.xlu0.b32.cont [7/16] 0.0, 128
        %364 = vxpose.xlu0.b32.cont [8/16] 0.0, 128
        %365 = vxpose.xlu0.b32.cont [9/16] 0.0, 128
        %366 = vxpose.xlu0.b32.cont [10/16] 0.0, 128
        %367 = vxpose.xlu0.b32.cont [11/16] 0.0, 128
        %368 = vxpose.xlu0.b32.cont [12/16] 0.0, 128
        %369 = vxpose.xlu0.b32.cont [13/16] 0.0, 128
        %370 = vxpose.xlu0.b32.cont [14/16] 0.0, 128
        %371 = vxpose.xlu0.b32.cont [15/16] 0.0, 128
        %372 = vxpose.xlu0.b32.end [16/16] 0.0, 128
        %v373 = vpop.trf.xlu0
        %v374 = vpop.trf.xlu0
        %v375 = vpop.trf.xlu0
        %v376 = vpop.trf.xlu0
        %v377 = vpop.trf.xlu0
        %v378 = vpop.trf.xlu0
        %v379 = vpop.trf.xlu0
        %v380 = vpop.trf.xlu0
        %v381 = vpop.trf.xlu0
        %v382 = vpop.trf.xlu0
        %v383 = vpop.trf.xlu0
        %v384 = vpop.trf.xlu0
        %v385 = vpop.trf.xlu0
        %v386 = vpop.trf.xlu0
        %v387 = vpop.trf.xlu0
        %v388 = vpop.trf.xlu0
        %389 = vxpose.xlu0.b32.start [1/16] %v334, 128
        %390 = vxpose.xlu0.b32.cont [2/16] %v338, 128
        %391 = vxpose.xlu0.b32.cont [3/16] %v342, 128
        %392 = vxpose.xlu0.b32.cont [4/16] %v346, 128
        %393 = vxpose.xlu0.b32.cont [5/16] 0.0, 128
        %394 = vxpose.xlu0.b32.cont [6/16] 0.0, 128
        %395 = vxpose.xlu0.b32.cont [7/16] 0.0, 128
        %396 = vxpose.xlu0.b32.cont [8/16] 0.0, 128
        %397 = vxpose.xlu0.b32.cont [9/16] 0.0, 128
        %398 = vxpose.xlu0.b32.cont [10/16] 0.0, 128
        %399 = vxpose.xlu0.b32.cont [11/16] 0.0, 128
        %400 = vxpose.xlu0.b32.cont [12/16] 0.0, 128
        %401 = vxpose.xlu0.b32.cont [13/16] 0.0, 128
        %402 = vxpose.xlu0.b32.cont [14/16] 0.0, 128
        %403 = vxpose.xlu0.b32.cont [15/16] 0.0, 128
        %404 = vxpose.xlu0.b32.end [16/16] 0.0, 128
        %v405 = vpop.trf.xlu0
        %v406 = vpop.trf.xlu0
        %v407 = vpop.trf.xlu0
        %v408 = vpop.trf.xlu0
        %v409 = vpop.trf.xlu0
        %v410 = vpop.trf.xlu0
        %v411 = vpop.trf.xlu0
        %v412 = vpop.trf.xlu0
        %v413 = vpop.trf.xlu0
        %v414 = vpop.trf.xlu0
        %v415 = vpop.trf.xlu0
        %v416 = vpop.trf.xlu0
        %v417 = vpop.trf.xlu0
        %v418 = vpop.trf.xlu0
        %v419 = vpop.trf.xlu0
        %v420 = vpop.trf.xlu0
        %421 = vxpose.xlu0.b32.start [1/16] %v335, 128
        %422 = vxpose.xlu0.b32.cont [2/16] %v339, 128
        %423 = vxpose.xlu0.b32.cont [3/16] %v343, 128
        %424 = vxpose.xlu0.b32.cont [4/16] %v347, 128
        %425 = vxpose.xlu0.b32.cont [5/16] 0.0, 128
        %426 = vxpose.xlu0.b32.cont [6/16] 0.0, 128
        %427 = vxpose.xlu0.b32.cont [7/16] 0.0, 128
        %428 = vxpose.xlu0.b32.cont [8/16] 0.0, 128
        %429 = vxpose.xlu0.b32.cont [9/16] 0.0, 128
        %430 = vxpose.xlu0.b32.cont [10/16] 0.0, 128
        %431 = vxpose.xlu0.b32.cont [11/16] 0.0, 128
        %432 = vxpose.xlu0.b32.cont [12/16] 0.0, 128
        %433 = vxpose.xlu0.b32.cont [13/16] 0.0, 128
        %434 = vxpose.xlu0.b32.cont [14/16] 0.0, 128
        %435 = vxpose.xlu0.b32.cont [15/16] 0.0, 128
        %436 = vxpose.xlu0.b32.end [16/16] 0.0, 128
        %v437 = vpop.trf.xlu0
        %v438 = vpop.trf.xlu0
        %v439 = vpop.trf.xlu0
        %v440 = vpop.trf.xlu0
        %v441 = vpop.trf.xlu0
        %v442 = vpop.trf.xlu0
        %v443 = vpop.trf.xlu0
        %v444 = vpop.trf.xlu0
        %v445 = vpop.trf.xlu0
        %v446 = vpop.trf.xlu0
        %v447 = vpop.trf.xlu0
        %v448 = vpop.trf.xlu0
        %v449 = vpop.trf.xlu0
        %v450 = vpop.trf.xlu0
        %v451 = vpop.trf.xlu0
        %v452 = vpop.trf.xlu0
        %453 = vxpose.xlu0.b32.start [1/16] %v336, 128
        %454 = vxpose.xlu0.b32.cont [2/16] %v340, 128
        %455 = vxpose.xlu0.b32.cont [3/16] %v344, 128
        %456 = vxpose.xlu0.b32.cont [4/16] %v348, 128
        %457 = vxpose.xlu0.b32.cont [5/16] 0.0, 128
        %458 = vxpose.xlu0.b32.cont [6/16] 0.0, 128
        %459 = vxpose.xlu0.b32.cont [7/16] 0.0, 128
        %460 = vxpose.xlu0.b32.cont [8/16] 0.0, 128
        %461 = vxpose.xlu0.b32.cont [9/16] 0.0, 128
        %462 = vxpose.xlu0.b32.cont [10/16] 0.0, 128
        %463 = vxpose.xlu0.b32.cont [11/16] 0.0, 128
        %464 = vxpose.xlu0.b32.cont [12/16] 0.0, 128
        %465 = vxpose.xlu0.b32.cont [13/16] 0.0, 128
        %466 = vxpose.xlu0.b32.cont [14/16] 0.0, 128
        %467 = vxpose.xlu0.b32.cont [15/16] 0.0, 128
        %468 = vxpose.xlu0.b32.end [16/16] 0.0, 128
        %v469 = vpop.trf.xlu0
        %v470 = vpop.trf.xlu0
        %v471 = vpop.trf.xlu0
        %v472 = vpop.trf.xlu0
        %v473 = vpop.trf.xlu0
        %v474 = vpop.trf.xlu0
        %v475 = vpop.trf.xlu0
        %v476 = vpop.trf.xlu0
        %v477 = vpop.trf.xlu0
        %v478 = vpop.trf.xlu0
        %v479 = vpop.trf.xlu0
        %v480 = vpop.trf.xlu0
        %v481 = vpop.trf.xlu0
        %v482 = vpop.trf.xlu0
        %v483 = vpop.trf.xlu0
        %v484 = vpop.trf.xlu0
        %vm485 = vcmask 261120
        %v487 = vsel %vm485, %v373, 0
        %v490 = vsel %vm485, %v374, 0
        %v493 = vsel %vm485, %v375, 0
        %v496 = vsel %vm485, %v376, 0
        %v499 = vsel %vm485, %v377, 0
        %v502 = vsel %vm485, %v378, 0
        %v505 = vsel %vm485, %v379, 0
        %v508 = vsel %vm485, %v380, 0
        %v511 = vsel %vm485, %v381, 0
        %v514 = vsel %vm485, %v382, 0
        %v517 = vsel %vm485, %v383, 0
        %v520 = vsel %vm485, %v384, 0
        %v523 = vsel %vm485, %v385, 0
        %v526 = vsel %vm485, %v386, 0
        %v529 = vsel %vm485, %v387, 0
        %v532 = vsel %vm485, %v388, 0
        %v535 = vsel %vm485, %v405, 0
        %v538 = vsel %vm485, %v406, 0
        %v541 = vsel %vm485, %v407, 0
        %v544 = vsel %vm485, %v408, 0
        %v547 = vsel %vm485, %v409, 0
        %v550 = vsel %vm485, %v410, 0
        %v553 = vsel %vm485, %v411, 0
        %v556 = vsel %vm485, %v412, 0
        %v559 = vsel %vm485, %v413, 0
        %v562 = vsel %vm485, %v414, 0
        %v565 = vsel %vm485, %v415, 0
        %v568 = vsel %vm485, %v416, 0
        %v571 = vsel %vm485, %v417, 0
        %v574 = vsel %vm485, %v418, 0
        %v577 = vsel %vm485, %v419, 0
        %v580 = vsel %vm485, %v420, 0
        %v583 = vsel %vm485, %v437, 0
        %v586 = vsel %vm485, %v438, 0
        %v589 = vsel %vm485, %v439, 0
        %v592 = vsel %vm485, %v440, 0
        %v595 = vsel %vm485, %v441, 0
        %v598 = vsel %vm485, %v442, 0
        %v601 = vsel %vm485, %v443, 0
        %v604 = vsel %vm485, %v444, 0
        %v607 = vsel %vm485, %v445, 0
        %v610 = vsel %vm485, %v446, 0
        %v613 = vsel %vm485, %v447, 0
        %v616 = vsel %vm485, %v448, 0
        %v619 = vsel %vm485, %v449, 0
        %v622 = vsel %vm485, %v450, 0
        %v625 = vsel %vm485, %v451, 0
        %v628 = vsel %vm485, %v452, 0
        %v631 = vsel %vm485, %v469, 0
        %v634 = vsel %vm485, %v470, 0
        %v637 = vsel %vm485, %v471, 0
        %v640 = vsel %vm485, %v472, 0
        %v643 = vsel %vm485, %v473, 0
        %v646 = vsel %vm485, %v474, 0
        %v649 = vsel %vm485, %v475, 0
        %v652 = vsel %vm485, %v476, 0
        %v655 = vsel %vm485, %v477, 0
        %v658 = vsel %vm485, %v478, 0
        %v661 = vsel %vm485, %v479, 0
        %v664 = vsel %vm485, %v480, 0
        %v667 = vsel %vm485, %v481, 0
        %v670 = vsel %vm485, %v482, 0
        %v673 = vsel %vm485, %v483, 0
        %v676 = vsel %vm485, %v484, 0
        %678 = vmatpush.msra.mxu0 0.0
        %679 = vmatpush.msra.mxu0 0.0
        %680 = vmatpush.msra.mxu0 0.0
        %681 = vmatpush.msra.mxu0 0.0
        %682 = vmatpush.msra.mxu0 0.0
        %683 = vmatpush.msra.mxu0 0.0
        %684 = vmatpush.msra.mxu0 0.0
        %685 = vmatpush.msra.mxu0 0.0
        %686 = vmatpush.msra.mxu0 0.0
        %687 = vmatpush.msra.mxu0 0.0
        %688 = vmatpush.msra.mxu0 0.0
        %689 = vmatpush.msra.mxu0 0.0
        %690 = vmatpush.msra.mxu0 %v355
        %691 = vmatpush.msra.mxu0 %v353
        %692 = vmatpush.msra.mxu0 %v351
        %693 = vmatpush.msra.mxu0 %v349
        %694 = vmatmul.f32.gmra.mxu0 %v487
        %v695 = vpop.f32.mrf.mxu0
        %v696 = vadd.f32 0.0, %v695
        %697 = vmatmul.f32.gmra.mxu0 %v490
        %v698 = vpop.f32.mrf.mxu0
        %v699 = vadd.f32 0.0, %v698
        %700 = vmatmul.f32.gmra.mxu0 %v493
        %v701 = vpop.f32.mrf.mxu0
        %v702 = vadd.f32 0.0, %v701
        %703 = vmatmul.f32.gmra.mxu0 %v496
        %v704 = vpop.f32.mrf.mxu0
        %v705 = vadd.f32 0.0, %v704
        %706 = vmatmul.f32.gmra.mxu0 %v499
        %v707 = vpop.f32.mrf.mxu0
        %v708 = vadd.f32 0.0, %v707
        %709 = vmatmul.f32.gmra.mxu0 %v502
        %v710 = vpop.f32.mrf.mxu0
        %v711 = vadd.f32 0.0, %v710
        %712 = vmatmul.f32.gmra.mxu0 %v505
        %v713 = vpop.f32.mrf.mxu0
        %v714 = vadd.f32 0.0, %v713
        %715 = vmatmul.f32.gmra.mxu0 %v508
        %v716 = vpop.f32.mrf.mxu0
        %v717 = vadd.f32 0.0, %v716
        %718 = vmatmul.f32.gmra.mxu0 %v511
        %v719 = vpop.f32.mrf.mxu0
        %v720 = vadd.f32 0.0, %v719
        %721 = vmatmul.f32.gmra.mxu0 %v514
        %v722 = vpop.f32.mrf.mxu0
        %v723 = vadd.f32 0.0, %v722
        %724 = vmatmul.f32.gmra.mxu0 %v517
        %v725 = vpop.f32.mrf.mxu0
        %v726 = vadd.f32 0.0, %v725
        %727 = vmatmul.f32.gmra.mxu0 %v520
        %v728 = vpop.f32.mrf.mxu0
        %v729 = vadd.f32 0.0, %v728
        %730 = vmatmul.f32.gmra.mxu0 %v523
        %v731 = vpop.f32.mrf.mxu0
        %v732 = vadd.f32 0.0, %v731
        %733 = vmatmul.f32.gmra.mxu0 %v526
        %v734 = vpop.f32.mrf.mxu0
        %v735 = vadd.f32 0.0, %v734
        %736 = vmatmul.f32.gmra.mxu0 %v529
        %v737 = vpop.f32.mrf.mxu0
        %v738 = vadd.f32 0.0, %v737
        %739 = vmatmul.f32.gmra.mxu0 %v532
        %v740 = vpop.f32.mrf.mxu0
        %v741 = vadd.f32 0.0, %v740
        %742 = vmatmul.f32.gmra.mxu0 %v535
        %v743 = vpop.f32.mrf.mxu0
        %v744 = vadd.f32 0.0, %v743
        %745 = vmatmul.f32.gmra.mxu0 %v538
        %v746 = vpop.f32.mrf.mxu0
        %v747 = vadd.f32 0.0, %v746
        %748 = vmatmul.f32.gmra.mxu0 %v541
        %v749 = vpop.f32.mrf.mxu0
        %v750 = vadd.f32 0.0, %v749
        %751 = vmatmul.f32.gmra.mxu0 %v544
        %v752 = vpop.f32.mrf.mxu0
        %v753 = vadd.f32 0.0, %v752
        %754 = vmatmul.f32.gmra.mxu0 %v547
        %v755 = vpop.f32.mrf.mxu0
        %v756 = vadd.f32 0.0, %v755
        %757 = vmatmul.f32.gmra.mxu0 %v550
        %v758 = vpop.f32.mrf.mxu0
        %v759 = vadd.f32 0.0, %v758
        %760 = vmatmul.f32.gmra.mxu0 %v553
        %v761 = vpop.f32.mrf.mxu0
        %v762 = vadd.f32 0.0, %v761
        %763 = vmatmul.f32.gmra.mxu0 %v556
        %v764 = vpop.f32.mrf.mxu0
        %v765 = vadd.f32 0.0, %v764
        %766 = vmatmul.f32.gmra.mxu0 %v559
        %v767 = vpop.f32.mrf.mxu0
        %v768 = vadd.f32 0.0, %v767
        %769 = vmatmul.f32.gmra.mxu0 %v562
        %v770 = vpop.f32.mrf.mxu0
        %v771 = vadd.f32 0.0, %v770
        %772 = vmatmul.f32.gmra.mxu0 %v565
        %v773 = vpop.f32.mrf.mxu0
        %v774 = vadd.f32 0.0, %v773
        %775 = vmatmul.f32.gmra.mxu0 %v568
        %v776 = vpop.f32.mrf.mxu0
        %v777 = vadd.f32 0.0, %v776
        %778 = vmatmul.f32.gmra.mxu0 %v571
        %v779 = vpop.f32.mrf.mxu0
        %v780 = vadd.f32 0.0, %v779
        %781 = vmatmul.f32.gmra.mxu0 %v574
        %v782 = vpop.f32.mrf.mxu0
        %v783 = vadd.f32 0.0, %v782
        %784 = vmatmul.f32.gmra.mxu0 %v577
        %v785 = vpop.f32.mrf.mxu0
        %v786 = vadd.f32 0.0, %v785
        %787 = vmatmul.f32.gmra.mxu0 %v580
        %v788 = vpop.f32.mrf.mxu0
        %v789 = vadd.f32 0.0, %v788
        %790 = vmatmul.f32.gmra.mxu0 %v583
        %v791 = vpop.f32.mrf.mxu0
        %v792 = vadd.f32 0.0, %v791
        %793 = vmatmul.f32.gmra.mxu0 %v586
        %v794 = vpop.f32.mrf.mxu0
        %v795 = vadd.f32 0.0, %v794
        %796 = vmatmul.f32.gmra.mxu0 %v589
        %v797 = vpop.f32.mrf.mxu0
        %v798 = vadd.f32 0.0, %v797
        %799 = vmatmul.f32.gmra.mxu0 %v592
        %v800 = vpop.f32.mrf.mxu0
        %v801 = vadd.f32 0.0, %v800
        %802 = vmatmul.f32.gmra.mxu0 %v595
        %v803 = vpop.f32.mrf.mxu0
        %v804 = vadd.f32 0.0, %v803
        %805 = vmatmul.f32.gmra.mxu0 %v598
        %v806 = vpop.f32.mrf.mxu0
        %v807 = vadd.f32 0.0, %v806
        %808 = vmatmul.f32.gmra.mxu0 %v601
        %v809 = vpop.f32.mrf.mxu0
        %v810 = vadd.f32 0.0, %v809
        %811 = vmatmul.f32.gmra.mxu0 %v604
        %v812 = vpop.f32.mrf.mxu0
        %v813 = vadd.f32 0.0, %v812
        %814 = vmatmul.f32.gmra.mxu0 %v607
        %v815 = vpop.f32.mrf.mxu0
        %v816 = vadd.f32 0.0, %v815
        %817 = vmatmul.f32.gmra.mxu0 %v610
        %v818 = vpop.f32.mrf.mxu0
        %v819 = vadd.f32 0.0, %v818
        %820 = vmatmul.f32.gmra.mxu0 %v613
        %v821 = vpop.f32.mrf.mxu0
        %v822 = vadd.f32 0.0, %v821
        %823 = vmatmul.f32.gmra.mxu0 %v616
        %v824 = vpop.f32.mrf.mxu0
        %v825 = vadd.f32 0.0, %v824
        %826 = vmatmul.f32.gmra.mxu0 %v619
        %v827 = vpop.f32.mrf.mxu0
        %v828 = vadd.f32 0.0, %v827
        %829 = vmatmul.f32.gmra.mxu0 %v622
        %v830 = vpop.f32.mrf.mxu0
        %v831 = vadd.f32 0.0, %v830
        %832 = vmatmul.f32.gmra.mxu0 %v625
        %v833 = vpop.f32.mrf.mxu0
        %v834 = vadd.f32 0.0, %v833
        %835 = vmatmul.f32.gmra.mxu0 %v628
        %v836 = vpop.f32.mrf.mxu0
        %v837 = vadd.f32 0.0, %v836
        %838 = vmatmul.f32.gmra.mxu0 %v631
        %v839 = vpop.f32.mrf.mxu0
        %v840 = vadd.f32 0.0, %v839
        %841 = vmatmul.f32.gmra.mxu0 %v634
        %v842 = vpop.f32.mrf.mxu0
        %v843 = vadd.f32 0.0, %v842
        %844 = vmatmul.f32.gmra.mxu0 %v637
        %v845 = vpop.f32.mrf.mxu0
        %v846 = vadd.f32 0.0, %v845
        %847 = vmatmul.f32.gmra.mxu0 %v640
        %v848 = vpop.f32.mrf.mxu0
        %v849 = vadd.f32 0.0, %v848
        %850 = vmatmul.f32.gmra.mxu0 %v643
        %v851 = vpop.f32.mrf.mxu0
        %v852 = vadd.f32 0.0, %v851
        %853 = vmatmul.f32.gmra.mxu0 %v646
        %v854 = vpop.f32.mrf.mxu0
        %v855 = vadd.f32 0.0, %v854
        %856 = vmatmul.f32.gmra.mxu0 %v649
        %v857 = vpop.f32.mrf.mxu0
        %v858 = vadd.f32 0.0, %v857
        %859 = vmatmul.f32.gmra.mxu0 %v652
        %v860 = vpop.f32.mrf.mxu0
        %v861 = vadd.f32 0.0, %v860
        %862 = vmatmul.f32.gmra.mxu0 %v655
        %v863 = vpop.f32.mrf.mxu0
        %v864 = vadd.f32 0.0, %v863
        %865 = vmatmul.f32.gmra.mxu0 %v658
        %v866 = vpop.f32.mrf.mxu0
        %v867 = vadd.f32 0.0, %v866
        %868 = vmatmul.f32.gmra.mxu0 %v661
        %v869 = vpop.f32.mrf.mxu0
        %v870 = vadd.f32 0.0, %v869
        %871 = vmatmul.f32.gmra.mxu0 %v664
        %v872 = vpop.f32.mrf.mxu0
        %v873 = vadd.f32 0.0, %v872
        %874 = vmatmul.f32.gmra.mxu0 %v667
        %v875 = vpop.f32.mrf.mxu0
        %v876 = vadd.f32 0.0, %v875
        %877 = vmatmul.f32.gmra.mxu0 %v670
        %v878 = vpop.f32.mrf.mxu0
        %v879 = vadd.f32 0.0, %v878
        %880 = vmatmul.f32.gmra.mxu0 %v673
        %v881 = vpop.f32.mrf.mxu0
        %v882 = vadd.f32 0.0, %v881
        %883 = vmatmul.f32.gmra.mxu0 %v676
        %v884 = vpop.f32.mrf.mxu0
        %v885 = vadd.f32 0.0, %v884
        %886 = vdwg.mxu0
        %887 = vmatpush.msra.mxu0 0.0
        %888 = vmatpush.msra.mxu0 0.0
        %889 = vmatpush.msra.mxu0 0.0
        %890 = vmatpush.msra.mxu0 0.0
        %891 = vmatpush.msra.mxu0 0.0
        %892 = vmatpush.msra.mxu0 0.0
        %893 = vmatpush.msra.mxu0 0.0
        %894 = vmatpush.msra.mxu0 0.0
        %895 = vmatpush.msra.mxu0 0.0
        %896 = vmatpush.msra.mxu0 0.0
        %897 = vmatpush.msra.mxu0 0.0
        %898 = vmatpush.msra.mxu0 0.0
        %899 = vmatpush.msra.mxu0 %v356
        %900 = vmatpush.msra.mxu0 %v354
        %901 = vmatpush.msra.mxu0 %v352
        %902 = vmatpush.msra.mxu0 %v350
        %903 = vmatmul.f32.gmra.mxu0 %v487
        %v904 = vpop.f32.mrf.mxu0
        %v905 = vadd.f32 0.0, %v904
        %906 = vmatmul.f32.gmra.mxu0 %v490
        %v907 = vpop.f32.mrf.mxu0
        %v908 = vadd.f32 0.0, %v907
        %909 = vmatmul.f32.gmra.mxu0 %v493
        %v910 = vpop.f32.mrf.mxu0
        %v911 = vadd.f32 0.0, %v910
        %912 = vmatmul.f32.gmra.mxu0 %v496
        %v913 = vpop.f32.mrf.mxu0
        %v914 = vadd.f32 0.0, %v913
        %915 = vmatmul.f32.gmra.mxu0 %v499
        %v916 = vpop.f32.mrf.mxu0
        %v917 = vadd.f32 0.0, %v916
        %918 = vmatmul.f32.gmra.mxu0 %v502
        %v919 = vpop.f32.mrf.mxu0
        %v920 = vadd.f32 0.0, %v919
        %921 = vmatmul.f32.gmra.mxu0 %v505
        %v922 = vpop.f32.mrf.mxu0
        %v923 = vadd.f32 0.0, %v922
        %924 = vmatmul.f32.gmra.mxu0 %v508
        %v925 = vpop.f32.mrf.mxu0
        %v926 = vadd.f32 0.0, %v925
        %927 = vmatmul.f32.gmra.mxu0 %v511
        %v928 = vpop.f32.mrf.mxu0
        %v929 = vadd.f32 0.0, %v928
        %930 = vmatmul.f32.gmra.mxu0 %v514
        %v931 = vpop.f32.mrf.mxu0
        %v932 = vadd.f32 0.0, %v931
        %933 = vmatmul.f32.gmra.mxu0 %v517
        %v934 = vpop.f32.mrf.mxu0
        %v935 = vadd.f32 0.0, %v934
        %936 = vmatmul.f32.gmra.mxu0 %v520
        %v937 = vpop.f32.mrf.mxu0
        %v938 = vadd.f32 0.0, %v937
        %939 = vmatmul.f32.gmra.mxu0 %v523
        %v940 = vpop.f32.mrf.mxu0
        %v941 = vadd.f32 0.0, %v940
        %942 = vmatmul.f32.gmra.mxu0 %v526
        %v943 = vpop.f32.mrf.mxu0
        %v944 = vadd.f32 0.0, %v943
        %945 = vmatmul.f32.gmra.mxu0 %v529
        %v946 = vpop.f32.mrf.mxu0
        %v947 = vadd.f32 0.0, %v946
        %948 = vmatmul.f32.gmra.mxu0 %v532
        %v949 = vpop.f32.mrf.mxu0
        %v950 = vadd.f32 0.0, %v949
        %951 = vmatmul.f32.gmra.mxu0 %v535
        %v952 = vpop.f32.mrf.mxu0
        %v953 = vadd.f32 0.0, %v952
        %954 = vmatmul.f32.gmra.mxu0 %v538
        %v955 = vpop.f32.mrf.mxu0
        %v956 = vadd.f32 0.0, %v955
        %957 = vmatmul.f32.gmra.mxu0 %v541
        %v958 = vpop.f32.mrf.mxu0
        %v959 = vadd.f32 0.0, %v958
        %960 = vmatmul.f32.gmra.mxu0 %v544
        %v961 = vpop.f32.mrf.mxu0
        %v962 = vadd.f32 0.0, %v961
        %963 = vmatmul.f32.gmra.mxu0 %v547
        %v964 = vpop.f32.mrf.mxu0
        %v965 = vadd.f32 0.0, %v964
        %966 = vmatmul.f32.gmra.mxu0 %v550
        %v967 = vpop.f32.mrf.mxu0
        %v968 = vadd.f32 0.0, %v967
        %969 = vmatmul.f32.gmra.mxu0 %v553
        %v970 = vpop.f32.mrf.mxu0
        %v971 = vadd.f32 0.0, %v970
        %972 = vmatmul.f32.gmra.mxu0 %v556
        %v973 = vpop.f32.mrf.mxu0
        %v974 = vadd.f32 0.0, %v973
        %975 = vmatmul.f32.gmra.mxu0 %v559
        %v976 = vpop.f32.mrf.mxu0
        %v977 = vadd.f32 0.0, %v976
        %978 = vmatmul.f32.gmra.mxu0 %v562
        %v979 = vpop.f32.mrf.mxu0
        %v980 = vadd.f32 0.0, %v979
        %981 = vmatmul.f32.gmra.mxu0 %v565
        %v982 = vpop.f32.mrf.mxu0
        %v983 = vadd.f32 0.0, %v982
        %984 = vmatmul.f32.gmra.mxu0 %v568
        %v985 = vpop.f32.mrf.mxu0
        %v986 = vadd.f32 0.0, %v985
        %987 = vmatmul.f32.gmra.mxu0 %v571
        %v988 = vpop.f32.mrf.mxu0
        %v989 = vadd.f32 0.0, %v988
        %990 = vmatmul.f32.gmra.mxu0 %v574
        %v991 = vpop.f32.mrf.mxu0
        %v992 = vadd.f32 0.0, %v991
        %993 = vmatmul.f32.gmra.mxu0 %v577
        %v994 = vpop.f32.mrf.mxu0
        %v995 = vadd.f32 0.0, %v994
        %996 = vmatmul.f32.gmra.mxu0 %v580
        %v997 = vpop.f32.mrf.mxu0
        %v998 = vadd.f32 0.0, %v997
        %999 = vmatmul.f32.gmra.mxu0 %v583
        %v1000 = vpop.f32.mrf.mxu0
        %v1001 = vadd.f32 0.0, %v1000
        %1002 = vmatmul.f32.gmra.mxu0 %v586
        %v1003 = vpop.f32.mrf.mxu0
        %v1004 = vadd.f32 0.0, %v1003
        %1005 = vmatmul.f32.gmra.mxu0 %v589
        %v1006 = vpop.f32.mrf.mxu0
        %v1007 = vadd.f32 0.0, %v1006
        %1008 = vmatmul.f32.gmra.mxu0 %v592
        %v1009 = vpop.f32.mrf.mxu0
        %v1010 = vadd.f32 0.0, %v1009
        %1011 = vmatmul.f32.gmra.mxu0 %v595
        %v1012 = vpop.f32.mrf.mxu0
        %v1013 = vadd.f32 0.0, %v1012
        %1014 = vmatmul.f32.gmra.mxu0 %v598
        %v1015 = vpop.f32.mrf.mxu0
        %v1016 = vadd.f32 0.0, %v1015
        %1017 = vmatmul.f32.gmra.mxu0 %v601
        %v1018 = vpop.f32.mrf.mxu0
        %v1019 = vadd.f32 0.0, %v1018
        %1020 = vmatmul.f32.gmra.mxu0 %v604
        %v1021 = vpop.f32.mrf.mxu0
        %v1022 = vadd.f32 0.0, %v1021
        %1023 = vmatmul.f32.gmra.mxu0 %v607
        %v1024 = vpop.f32.mrf.mxu0
        %v1025 = vadd.f32 0.0, %v1024
        %1026 = vmatmul.f32.gmra.mxu0 %v610
        %v1027 = vpop.f32.mrf.mxu0
        %v1028 = vadd.f32 0.0, %v1027
        %1029 = vmatmul.f32.gmra.mxu0 %v613
        %v1030 = vpop.f32.mrf.mxu0
        %v1031 = vadd.f32 0.0, %v1030
        %1032 = vmatmul.f32.gmra.mxu0 %v616
        %v1033 = vpop.f32.mrf.mxu0
        %v1034 = vadd.f32 0.0, %v1033
        %1035 = vmatmul.f32.gmra.mxu0 %v619
        %v1036 = vpop.f32.mrf.mxu0
        %v1037 = vadd.f32 0.0, %v1036
        %1038 = vmatmul.f32.gmra.mxu0 %v622
        %v1039 = vpop.f32.mrf.mxu0
        %v1040 = vadd.f32 0.0, %v1039
        %1041 = vmatmul.f32.gmra.mxu0 %v625
        %v1042 = vpop.f32.mrf.mxu0
        %v1043 = vadd.f32 0.0, %v1042
        %1044 = vmatmul.f32.gmra.mxu0 %v628
        %v1045 = vpop.f32.mrf.mxu0
        %v1046 = vadd.f32 0.0, %v1045
        %1047 = vmatmul.f32.gmra.mxu0 %v631
        %v1048 = vpop.f32.mrf.mxu0
        %v1049 = vadd.f32 0.0, %v1048
        %1050 = vmatmul.f32.gmra.mxu0 %v634
        %v1051 = vpop.f32.mrf.mxu0
        %v1052 = vadd.f32 0.0, %v1051
        %1053 = vmatmul.f32.gmra.mxu0 %v637
        %v1054 = vpop.f32.mrf.mxu0
        %v1055 = vadd.f32 0.0, %v1054
        %1056 = vmatmul.f32.gmra.mxu0 %v640
        %v1057 = vpop.f32.mrf.mxu0
        %v1058 = vadd.f32 0.0, %v1057
        %1059 = vmatmul.f32.gmra.mxu0 %v643
        %v1060 = vpop.f32.mrf.mxu0
        %v1061 = vadd.f32 0.0, %v1060
        %1062 = vmatmul.f32.gmra.mxu0 %v646
        %v1063 = vpop.f32.mrf.mxu0
        %v1064 = vadd.f32 0.0, %v1063
        %1065 = vmatmul.f32.gmra.mxu0 %v649
        %v1066 = vpop.f32.mrf.mxu0
        %v1067 = vadd.f32 0.0, %v1066
        %1068 = vmatmul.f32.gmra.mxu0 %v652
        %v1069 = vpop.f32.mrf.mxu0
        %v1070 = vadd.f32 0.0, %v1069
        %1071 = vmatmul.f32.gmra.mxu0 %v655
        %v1072 = vpop.f32.mrf.mxu0
        %v1073 = vadd.f32 0.0, %v1072
        %1074 = vmatmul.f32.gmra.mxu0 %v658
        %v1075 = vpop.f32.mrf.mxu0
        %v1076 = vadd.f32 0.0, %v1075
        %1077 = vmatmul.f32.gmra.mxu0 %v661
        %v1078 = vpop.f32.mrf.mxu0
        %v1079 = vadd.f32 0.0, %v1078
        %1080 = vmatmul.f32.gmra.mxu0 %v664
        %v1081 = vpop.f32.mrf.mxu0
        %v1082 = vadd.f32 0.0, %v1081
        %1083 = vmatmul.f32.gmra.mxu0 %v667
        %v1084 = vpop.f32.mrf.mxu0
        %v1085 = vadd.f32 0.0, %v1084
        %1086 = vmatmul.f32.gmra.mxu0 %v670
        %v1087 = vpop.f32.mrf.mxu0
        %v1088 = vadd.f32 0.0, %v1087
        %1089 = vmatmul.f32.gmra.mxu0 %v673
        %v1090 = vpop.f32.mrf.mxu0
        %v1091 = vadd.f32 0.0, %v1090
        %1092 = vmatmul.f32.gmra.mxu0 %v676
        %v1093 = vpop.f32.mrf.mxu0
        %v1094 = vadd.f32 0.0, %v1093
        %1095 = vdwg.mxu0
        %v1096 = vmax.f32 %v696, %v702
        %v1097 = vmax.f32 %v699, %v705
        %v1098 = vmax.f32 %v1096, %v708
        %v1099 = vmax.f32 %v1097, %v711
        %v1100 = vmax.f32 %v1098, %v714
        %v1101 = vmax.f32 %v1099, %v717
        %v1102 = vmax.f32 %v1100, %v720
        %v1103 = vmax.f32 %v1101, %v723
        %v1104 = vmax.f32 %v1102, %v726
        %v1105 = vmax.f32 %v1103, %v729
        %v1106 = vmax.f32 %v1104, %v732
        %v1107 = vmax.f32 %v1105, %v735
        %v1108 = vmax.f32 %v1106, %v738
        %v1109 = vmax.f32 %v1107, %v741
        %v1110 = vmax.f32 %v1108, %v744
        %v1111 = vmax.f32 %v1109, %v747
        %v1112 = vmax.f32 %v1110, %v750
        %v1113 = vmax.f32 %v1111, %v753
        %v1114 = vmax.f32 %v1112, %v756
        %v1115 = vmax.f32 %v1113, %v759
        %v1116 = vmax.f32 %v1114, %v762
        %v1117 = vmax.f32 %v1115, %v765
        %v1118 = vmax.f32 %v1116, %v768
        %v1119 = vmax.f32 %v1117, %v771
        %v1120 = vmax.f32 %v1118, %v774
        %v1121 = vmax.f32 %v1119, %v777
        %v1122 = vmax.f32 %v1120, %v780
        %v1123 = vmax.f32 %v1121, %v783
        %v1124 = vmax.f32 %v1122, %v786
        %v1125 = vmax.f32 %v1123, %v789
        %v1126 = vmax.f32 %v1124, %v792
        %v1127 = vmax.f32 %v1125, %v795
        %v1128 = vmax.f32 %v1126, %v798
        %v1129 = vmax.f32 %v1127, %v801
        %v1130 = vmax.f32 %v1128, %v804
        %v1131 = vmax.f32 %v1129, %v807
        %v1132 = vmax.f32 %v1130, %v810
        %v1133 = vmax.f32 %v1131, %v813
        %v1134 = vmax.f32 %v1132, %v816
        %v1135 = vmax.f32 %v1133, %v819
        %v1136 = vmax.f32 %v1134, %v822
        %v1137 = vmax.f32 %v1135, %v825
        %v1138 = vmax.f32 %v1136, %v828
        %v1139 = vmax.f32 %v1137, %v831
        %v1140 = vmax.f32 %v1138, %v834
        %v1141 = vmax.f32 %v1139, %v837
        %v1142 = vmax.f32 %v1140, %v840
        %v1143 = vmax.f32 %v1141, %v843
        %v1144 = vmax.f32 %v1142, %v846
        %v1145 = vmax.f32 %v1143, %v849
        %v1146 = vmax.f32 %v1144, %v852
        %v1147 = vmax.f32 %v1145, %v855
        %v1148 = vmax.f32 %v1146, %v858
        %v1149 = vmax.f32 %v1147, %v861
        %v1150 = vmax.f32 %v1148, %v864
        %v1151 = vmax.f32 %v1149, %v867
        %v1152 = vmax.f32 %v1150, %v870
        %v1153 = vmax.f32 %v1151, %v873
        %v1154 = vmax.f32 %v1152, %v876
        %v1155 = vmax.f32 %v1153, %v879
        %v1156 = vmax.f32 %v1154, %v882
        %v1157 = vmax.f32 %v1155, %v885
        %v1158 = vmax.f32 %v1156, %v1157
        %v1159 = vrot.slane %v1158, 4
        %v1160 = vmax.f32 %v1158, %v1159
        %v1161 = vrot.slane %v1160, 2
        %v1162 = vmax.f32 %v1160, %v1161
        %v1163 = vrot.slane %v1162, 1
        %v1164 = vmax.f32 %v1162, %v1163
        %v1165 = vmax.f32 %v905, %v911
        %v1166 = vmax.f32 %v908, %v914
        %v1167 = vmax.f32 %v1165, %v917
        %v1168 = vmax.f32 %v1166, %v920
        %v1169 = vmax.f32 %v1167, %v923
        %v1170 = vmax.f32 %v1168, %v926
        %v1171 = vmax.f32 %v1169, %v929
        %v1172 = vmax.f32 %v1170, %v932
        %v1173 = vmax.f32 %v1171, %v935
        %v1174 = vmax.f32 %v1172, %v938
        %v1175 = vmax.f32 %v1173, %v941
        %v1176 = vmax.f32 %v1174, %v944
        %v1177 = vmax.f32 %v1175, %v947
        %v1178 = vmax.f32 %v1176, %v950
        %v1179 = vmax.f32 %v1177, %v953
        %v1180 = vmax.f32 %v1178, %v956
        %v1181 = vmax.f32 %v1179, %v959
        %v1182 = vmax.f32 %v1180, %v962
        %v1183 = vmax.f32 %v1181, %v965
        %v1184 = vmax.f32 %v1182, %v968
        %v1185 = vmax.f32 %v1183, %v971
        %v1186 = vmax.f32 %v1184, %v974
        %v1187 = vmax.f32 %v1185, %v977
        %v1188 = vmax.f32 %v1186, %v980
        %v1189 = vmax.f32 %v1187, %v983
        %v1190 = vmax.f32 %v1188, %v986
        %v1191 = vmax.f32 %v1189, %v989
        %v1192 = vmax.f32 %v1190, %v992
        %v1193 = vmax.f32 %v1191, %v995
        %v1194 = vmax.f32 %v1192, %v998
        %v1195 = vmax.f32 %v1193, %v1001
        %v1196 = vmax.f32 %v1194, %v1004
        %v1197 = vmax.f32 %v1195, %v1007
        %v1198 = vmax.f32 %v1196, %v1010
        %v1199 = vmax.f32 %v1197, %v1013
        %v1200 = vmax.f32 %v1198, %v1016
        %v1201 = vmax.f32 %v1199, %v1019
        %v1202 = vmax.f32 %v1200, %v1022
        %v1203 = vmax.f32 %v1201, %v1025
        %v1204 = vmax.f32 %v1202, %v1028
        %v1205 = vmax.f32 %v1203, %v1031
        %v1206 = vmax.f32 %v1204, %v1034
        %v1207 = vmax.f32 %v1205, %v1037
        %v1208 = vmax.f32 %v1206, %v1040
        %v1209 = vmax.f32 %v1207, %v1043
        %v1210 = vmax.f32 %v1208, %v1046
        %v1211 = vmax.f32 %v1209, %v1049
        %v1212 = vmax.f32 %v1210, %v1052
        %v1213 = vmax.f32 %v1211, %v1055
        %v1214 = vmax.f32 %v1212, %v1058
        %v1215 = vmax.f32 %v1213, %v1061
        %v1216 = vmax.f32 %v1214, %v1064
        %v1217 = vmax.f32 %v1215, %v1067
        %v1218 = vmax.f32 %v1216, %v1070
        %v1219 = vmax.f32 %v1217, %v1073
        %v1220 = vmax.f32 %v1218, %v1076
        %v1221 = vmax.f32 %v1219, %v1079
        %v1222 = vmax.f32 %v1220, %v1082
        %v1223 = vmax.f32 %v1221, %v1085
        %v1224 = vmax.f32 %v1222, %v1088
        %v1225 = vmax.f32 %v1223, %v1091
        %v1226 = vmax.f32 %v1224, %v1094
        %v1227 = vmax.f32 %v1225, %v1226
        %v1228 = vrot.slane %v1227, 4
        %v1229 = vmax.f32 %v1227, %v1228
        %v1230 = vrot.slane %v1229, 2
        %v1231 = vmax.f32 %v1229, %v1230
        %v1232 = vrot.slane %v1231, 1
        %v1233 = vmax.f32 %v1231, %v1232
        %v1234 = vsub.f32 %v696, %v1164
        %v1235 = vsub.f32 %v905, %v1233
        %v1236 = vsub.f32 %v699, %v1164
        %v1237 = vsub.f32 %v908, %v1233
        %v1238 = vsub.f32 %v702, %v1164
        %v1239 = vsub.f32 %v911, %v1233
        %v1240 = vsub.f32 %v705, %v1164
        %v1241 = vsub.f32 %v914, %v1233
        %v1242 = vsub.f32 %v708, %v1164
        %v1243 = vsub.f32 %v917, %v1233
        %v1244 = vsub.f32 %v711, %v1164
        %v1245 = vsub.f32 %v920, %v1233
        %v1246 = vsub.f32 %v714, %v1164
        %v1247 = vsub.f32 %v923, %v1233
        %v1248 = vsub.f32 %v717, %v1164
        %v1249 = vsub.f32 %v926, %v1233
        %v1250 = vsub.f32 %v720, %v1164
        %v1251 = vsub.f32 %v929, %v1233
        %v1252 = vsub.f32 %v723, %v1164
        %v1253 = vsub.f32 %v932, %v1233
        %v1254 = vsub.f32 %v726, %v1164
        %v1255 = vsub.f32 %v935, %v1233
        %v1256 = vsub.f32 %v729, %v1164
        %v1257 = vsub.f32 %v938, %v1233
        %v1258 = vsub.f32 %v732, %v1164
        %v1259 = vsub.f32 %v941, %v1233
        %v1260 = vsub.f32 %v735, %v1164
        %v1261 = vsub.f32 %v944, %v1233
        %v1262 = vsub.f32 %v738, %v1164
        %v1263 = vsub.f32 %v947, %v1233
        %v1264 = vsub.f32 %v741, %v1164
        %v1265 = vsub.f32 %v950, %v1233
        %v1266 = vsub.f32 %v744, %v1164
        %v1267 = vsub.f32 %v953, %v1233
        %v1268 = vsub.f32 %v747, %v1164
        %v1269 = vsub.f32 %v956, %v1233
        %v1270 = vsub.f32 %v750, %v1164
        %v1271 = vsub.f32 %v959, %v1233
        %v1272 = vsub.f32 %v753, %v1164
        %v1273 = vsub.f32 %v962, %v1233
        %v1274 = vsub.f32 %v756, %v1164
        %v1275 = vsub.f32 %v965, %v1233
        %v1276 = vsub.f32 %v759, %v1164
        %v1277 = vsub.f32 %v968, %v1233
        %v1278 = vsub.f32 %v762, %v1164
        %v1279 = vsub.f32 %v971, %v1233
        %v1280 = vsub.f32 %v765, %v1164
        %v1281 = vsub.f32 %v974, %v1233
        %v1282 = vsub.f32 %v768, %v1164
        %v1283 = vsub.f32 %v977, %v1233
        %v1284 = vsub.f32 %v771, %v1164
        %v1285 = vsub.f32 %v980, %v1233
        %v1286 = vsub.f32 %v774, %v1164
        %v1287 = vsub.f32 %v983, %v1233
        %v1288 = vsub.f32 %v777, %v1164
        %v1289 = vsub.f32 %v986, %v1233
        %v1290 = vsub.f32 %v780, %v1164
        %v1291 = vsub.f32 %v989, %v1233
        %v1292 = vsub.f32 %v783, %v1164
        %v1293 = vsub.f32 %v992, %v1233
        %v1294 = vsub.f32 %v786, %v1164
        %v1295 = vsub.f32 %v995, %v1233
        %v1296 = vsub.f32 %v789, %v1164
        %v1297 = vsub.f32 %v998, %v1233
        %v1298 = vsub.f32 %v792, %v1164
        %v1299 = vsub.f32 %v1001, %v1233
        %v1300 = vsub.f32 %v795, %v1164
        %v1301 = vsub.f32 %v1004, %v1233
        %v1302 = vsub.f32 %v798, %v1164
        %v1303 = vsub.f32 %v1007, %v1233
        %v1304 = vsub.f32 %v801, %v1164
        %v1305 = vsub.f32 %v1010, %v1233
        %v1306 = vsub.f32 %v804, %v1164
        %v1307 = vsub.f32 %v1013, %v1233
        %v1308 = vsub.f32 %v807, %v1164
        %v1309 = vsub.f32 %v1016, %v1233
        %v1310 = vsub.f32 %v810, %v1164
        %v1311 = vsub.f32 %v1019, %v1233
        %v1312 = vsub.f32 %v813, %v1164
        %v1313 = vsub.f32 %v1022, %v1233
        %v1314 = vsub.f32 %v816, %v1164
        %v1315 = vsub.f32 %v1025, %v1233
        %v1316 = vsub.f32 %v819, %v1164
        %v1317 = vsub.f32 %v1028, %v1233
        %v1318 = vsub.f32 %v822, %v1164
        %v1319 = vsub.f32 %v1031, %v1233
        %v1320 = vsub.f32 %v825, %v1164
        %v1321 = vsub.f32 %v1034, %v1233
        %v1322 = vsub.f32 %v828, %v1164
        %v1323 = vsub.f32 %v1037, %v1233
        %v1324 = vsub.f32 %v831, %v1164
        %v1325 = vsub.f32 %v1040, %v1233
        %v1326 = vsub.f32 %v834, %v1164
        %v1327 = vsub.f32 %v1043, %v1233
        %v1328 = vsub.f32 %v837, %v1164
        %v1329 = vsub.f32 %v1046, %v1233
        %v1330 = vsub.f32 %v840, %v1164
        %v1331 = vsub.f32 %v1049, %v1233
        %v1332 = vsub.f32 %v843, %v1164
        %v1333 = vsub.f32 %v1052, %v1233
        %v1334 = vsub.f32 %v846, %v1164
        %v1335 = vsub.f32 %v1055, %v1233
        %v1336 = vsub.f32 %v849, %v1164
        %v1337 = vsub.f32 %v1058, %v1233
        %v1338 = vsub.f32 %v852, %v1164
        %v1339 = vsub.f32 %v1061, %v1233
        %v1340 = vsub.f32 %v855, %v1164
        %v1341 = vsub.f32 %v1064, %v1233
        %v1342 = vsub.f32 %v858, %v1164
        %v1343 = vsub.f32 %v1067, %v1233
        %v1344 = vsub.f32 %v861, %v1164
        %v1345 = vsub.f32 %v1070, %v1233
        %v1346 = vsub.f32 %v864, %v1164
        %v1347 = vsub.f32 %v1073, %v1233
        %v1348 = vsub.f32 %v867, %v1164
        %v1349 = vsub.f32 %v1076, %v1233
        %v1350 = vsub.f32 %v870, %v1164
        %v1351 = vsub.f32 %v1079, %v1233
        %v1352 = vsub.f32 %v873, %v1164
        %v1353 = vsub.f32 %v1082, %v1233
        %v1354 = vsub.f32 %v876, %v1164
        %v1355 = vsub.f32 %v1085, %v1233
        %v1356 = vsub.f32 %v879, %v1164
        %v1357 = vsub.f32 %v1088, %v1233
        %v1358 = vsub.f32 %v882, %v1164
        %v1359 = vsub.f32 %v1091, %v1233
        %v1360 = vsub.f32 %v885, %v1164
        %v1361 = vsub.f32 %v1094, %v1233
        %v1362 = vmul.f32 %v1234, 1.442695
        %v1363 = vpow.pop %v1362
        %v1364 = vmul.f32 %v1235, 1.442695
        %v1365 = vpow.pop %v1364
        %v1366 = vmul.f32 %v1236, 1.442695
        %v1367 = vpow.pop %v1366
        %v1368 = vmul.f32 %v1237, 1.442695
        %v1369 = vpow.pop %v1368
        %v1370 = vmul.f32 %v1238, 1.442695
        %v1371 = vpow.pop %v1370
        %v1372 = vmul.f32 %v1239, 1.442695
        %v1373 = vpow.pop %v1372
        %v1374 = vmul.f32 %v1240, 1.442695
        %v1375 = vpow.pop %v1374
        %v1376 = vmul.f32 %v1241, 1.442695
        %v1377 = vpow.pop %v1376
        %v1378 = vmul.f32 %v1242, 1.442695
        %v1379 = vpow.pop %v1378
        %v1380 = vmul.f32 %v1243, 1.442695
        %v1381 = vpow.pop %v1380
        %v1382 = vmul.f32 %v1244, 1.442695
        %v1383 = vpow.pop %v1382
        %v1384 = vmul.f32 %v1245, 1.442695
        %v1385 = vpow.pop %v1384
        %v1386 = vmul.f32 %v1246, 1.442695
        %v1387 = vpow.pop %v1386
        %v1388 = vmul.f32 %v1247, 1.442695
        %v1389 = vpow.pop %v1388
        %v1390 = vmul.f32 %v1248, 1.442695
        %v1391 = vpow.pop %v1390
        %v1392 = vmul.f32 %v1249, 1.442695
        %v1393 = vpow.pop %v1392
        %v1394 = vmul.f32 %v1250, 1.442695
        %v1395 = vpow.pop %v1394
        %v1396 = vmul.f32 %v1251, 1.442695
        %v1397 = vpow.pop %v1396
        %v1398 = vmul.f32 %v1252, 1.442695
        %v1399 = vpow.pop %v1398
        %v1400 = vmul.f32 %v1253, 1.442695
        %v1401 = vpow.pop %v1400
        %v1402 = vmul.f32 %v1254, 1.442695
        %v1403 = vpow.pop %v1402
        %v1404 = vmul.f32 %v1255, 1.442695
        %v1405 = vpow.pop %v1404
        %v1406 = vmul.f32 %v1256, 1.442695
        %v1407 = vpow.pop %v1406
        %v1408 = vmul.f32 %v1257, 1.442695
        %v1409 = vpow.pop %v1408
        %v1410 = vmul.f32 %v1258, 1.442695
        %v1411 = vpow.pop %v1410
        %v1412 = vmul.f32 %v1259, 1.442695
        %v1413 = vpow.pop %v1412
        %v1414 = vmul.f32 %v1260, 1.442695
        %v1415 = vpow.pop %v1414
        %v1416 = vmul.f32 %v1261, 1.442695
        %v1417 = vpow.pop %v1416
        %v1418 = vmul.f32 %v1262, 1.442695
        %v1419 = vpow.pop %v1418
        %v1420 = vmul.f32 %v1263, 1.442695
        %v1421 = vpow.pop %v1420
        %v1422 = vmul.f32 %v1264, 1.442695
        %v1423 = vpow.pop %v1422
        %v1424 = vmul.f32 %v1265, 1.442695
        %v1425 = vpow.pop %v1424
        %v1426 = vmul.f32 %v1266, 1.442695
        %v1427 = vpow.pop %v1426
        %v1428 = vmul.f32 %v1267, 1.442695
        %v1429 = vpow.pop %v1428
        %v1430 = vmul.f32 %v1268, 1.442695
        %v1431 = vpow.pop %v1430
        %v1432 = vmul.f32 %v1269, 1.442695
        %v1433 = vpow.pop %v1432
        %v1434 = vmul.f32 %v1270, 1.442695
        %v1435 = vpow.pop %v1434
        %v1436 = vmul.f32 %v1271, 1.442695
        %v1437 = vpow.pop %v1436
        %v1438 = vmul.f32 %v1272, 1.442695
        %v1439 = vpow.pop %v1438
        %v1440 = vmul.f32 %v1273, 1.442695
        %v1441 = vpow.pop %v1440
        %v1442 = vmul.f32 %v1274, 1.442695
        %v1443 = vpow.pop %v1442
        %v1444 = vmul.f32 %v1275, 1.442695
        %v1445 = vpow.pop %v1444
        %v1446 = vmul.f32 %v1276, 1.442695
        %v1447 = vpow.pop %v1446
        %v1448 = vmul.f32 %v1277, 1.442695
        %v1449 = vpow.pop %v1448
        %v1450 = vmul.f32 %v1278, 1.442695
        %v1451 = vpow.pop %v1450
        %v1452 = vmul.f32 %v1279, 1.442695
        %v1453 = vpow.pop %v1452
        %v1454 = vmul.f32 %v1280, 1.442695
        %v1455 = vpow.pop %v1454
        %v1456 = vmul.f32 %v1281, 1.442695
        %v1457 = vpow.pop %v1456
        %v1458 = vmul.f32 %v1282, 1.442695
        %v1459 = vpow.pop %v1458
        %v1460 = vmul.f32 %v1283, 1.442695
        %v1461 = vpow.pop %v1460
        %v1462 = vmul.f32 %v1284, 1.442695
        %v1463 = vpow.pop %v1462
        %v1464 = vmul.f32 %v1285, 1.442695
        %v1465 = vpow.pop %v1464
        %v1466 = vmul.f32 %v1286, 1.442695
        %v1467 = vpow.pop %v1466
        %v1468 = vmul.f32 %v1287, 1.442695
        %v1469 = vpow.pop %v1468
        %v1470 = vmul.f32 %v1288, 1.442695
        %v1471 = vpow.pop %v1470
        %v1472 = vmul.f32 %v1289, 1.442695
        %v1473 = vpow.pop %v1472
        %v1474 = vmul.f32 %v1290, 1.442695
        %v1475 = vpow.pop %v1474
        %v1476 = vmul.f32 %v1291, 1.442695
        %v1477 = vpow.pop %v1476
        %v1478 = vmul.f32 %v1292, 1.442695
        %v1479 = vpow.pop %v1478
        %v1480 = vmul.f32 %v1293, 1.442695
        %v1481 = vpow.pop %v1480
        %v1482 = vmul.f32 %v1294, 1.442695
        %v1483 = vpow.pop %v1482
        %v1484 = vmul.f32 %v1295, 1.442695
        %v1485 = vpow.pop %v1484
        %v1486 = vmul.f32 %v1296, 1.442695
        %v1487 = vpow.pop %v1486
        %v1488 = vmul.f32 %v1297, 1.442695
        %v1489 = vpow.pop %v1488
        %v1490 = vmul.f32 %v1298, 1.442695
        %v1491 = vpow.pop %v1490
        %v1492 = vmul.f32 %v1299, 1.442695
        %v1493 = vpow.pop %v1492
        %v1494 = vmul.f32 %v1300, 1.442695
        %v1495 = vpow.pop %v1494
        %v1496 = vmul.f32 %v1301, 1.442695
        %v1497 = vpow.pop %v1496
        %v1498 = vmul.f32 %v1302, 1.442695
        %v1499 = vpow.pop %v1498
        %v1500 = vmul.f32 %v1303, 1.442695
        %v1501 = vpow.pop %v1500
        %v1502 = vmul.f32 %v1304, 1.442695
        %v1503 = vpow.pop %v1502
        %v1504 = vmul.f32 %v1305, 1.442695
        %v1505 = vpow.pop %v1504
        %v1506 = vmul.f32 %v1306, 1.442695
        %v1507 = vpow.pop %v1506
        %v1508 = vmul.f32 %v1307, 1.442695
        %v1509 = vpow.pop %v1508
        %v1510 = vmul.f32 %v1308, 1.442695
        %v1511 = vpow.pop %v1510
        %v1512 = vmul.f32 %v1309, 1.442695
        %v1513 = vpow.pop %v1512
        %v1514 = vmul.f32 %v1310, 1.442695
        %v1515 = vpow.pop %v1514
        %v1516 = vmul.f32 %v1311, 1.442695
        %v1517 = vpow.pop %v1516
        %v1518 = vmul.f32 %v1312, 1.442695
        %v1519 = vpow.pop %v1518
        %v1520 = vmul.f32 %v1313, 1.442695
        %v1521 = vpow.pop %v1520
        %v1522 = vmul.f32 %v1314, 1.442695
        %v1523 = vpow.pop %v1522
        %v1524 = vmul.f32 %v1315, 1.442695
        %v1525 = vpow.pop %v1524
        %v1526 = vmul.f32 %v1316, 1.442695
        %v1527 = vpow.pop %v1526
        %v1528 = vmul.f32 %v1317, 1.442695
        %v1529 = vpow.pop %v1528
        %v1530 = vmul.f32 %v1318, 1.442695
        %v1531 = vpow.pop %v1530
        %v1532 = vmul.f32 %v1319, 1.442695
        %v1533 = vpow.pop %v1532
        %v1534 = vmul.f32 %v1320, 1.442695
        %v1535 = vpow.pop %v1534
        %v1536 = vmul.f32 %v1321, 1.442695
        %v1537 = vpow.pop %v1536
        %v1538 = vmul.f32 %v1322, 1.442695
        %v1539 = vpow.pop %v1538
        %v1540 = vmul.f32 %v1323, 1.442695
        %v1541 = vpow.pop %v1540
        %v1542 = vmul.f32 %v1324, 1.442695
        %v1543 = vpow.pop %v1542
        %v1544 = vmul.f32 %v1325, 1.442695
        %v1545 = vpow.pop %v1544
        %v1546 = vmul.f32 %v1326, 1.442695
        %v1547 = vpow.pop %v1546
        %v1548 = vmul.f32 %v1327, 1.442695
        %v1549 = vpow.pop %v1548
        %v1550 = vmul.f32 %v1328, 1.442695
        %v1551 = vpow.pop %v1550
        %v1552 = vmul.f32 %v1329, 1.442695
        %v1553 = vpow.pop %v1552
        %v1554 = vmul.f32 %v1330, 1.442695
        %v1555 = vpow.pop %v1554
        %v1556 = vmul.f32 %v1331, 1.442695
        %v1557 = vpow.pop %v1556
        %v1558 = vmul.f32 %v1332, 1.442695
        %v1559 = vpow.pop %v1558
        %v1560 = vmul.f32 %v1333, 1.442695
        %v1561 = vpow.pop %v1560
        %v1562 = vmul.f32 %v1334, 1.442695
        %v1563 = vpow.pop %v1562
        %v1564 = vmul.f32 %v1335, 1.442695
        %v1565 = vpow.pop %v1564
        %v1566 = vmul.f32 %v1336, 1.442695
        %v1567 = vpow.pop %v1566
        %v1568 = vmul.f32 %v1337, 1.442695
        %v1569 = vpow.pop %v1568
        %v1570 = vmul.f32 %v1338, 1.442695
        %v1571 = vpow.pop %v1570
        %v1572 = vmul.f32 %v1339, 1.442695
        %v1573 = vpow.pop %v1572
        %v1574 = vmul.f32 %v1340, 1.442695
        %v1575 = vpow.pop %v1574
        %v1576 = vmul.f32 %v1341, 1.442695
        %v1577 = vpow.pop %v1576
        %v1578 = vmul.f32 %v1342, 1.442695
        %v1579 = vpow.pop %v1578
        %v1580 = vmul.f32 %v1343, 1.442695
        %v1581 = vpow.pop %v1580
        %v1582 = vmul.f32 %v1344, 1.442695
        %v1583 = vpow.pop %v1582
        %v1584 = vmul.f32 %v1345, 1.442695
        %v1585 = vpow.pop %v1584
        %v1586 = vmul.f32 %v1346, 1.442695
        %v1587 = vpow.pop %v1586
        %v1588 = vmul.f32 %v1347, 1.442695
        %v1589 = vpow.pop %v1588
        %v1590 = vmul.f32 %v1348, 1.442695
        %v1591 = vpow.pop %v1590
        %v1592 = vmul.f32 %v1349, 1.442695
        %v1593 = vpow.pop %v1592
        %v1594 = vmul.f32 %v1350, 1.442695
        %v1595 = vpow.pop %v1594
        %v1596 = vmul.f32 %v1351, 1.442695
        %v1597 = vpow.pop %v1596
        %v1598 = vmul.f32 %v1352, 1.442695
        %v1599 = vpow.pop %v1598
        %v1600 = vmul.f32 %v1353, 1.442695
        %v1601 = vpow.pop %v1600
        %v1602 = vmul.f32 %v1354, 1.442695
        %v1603 = vpow.pop %v1602
        %v1604 = vmul.f32 %v1355, 1.442695
        %v1605 = vpow.pop %v1604
        %v1606 = vmul.f32 %v1356, 1.442695
        %v1607 = vpow.pop %v1606
        %v1608 = vmul.f32 %v1357, 1.442695
        %v1609 = vpow.pop %v1608
        %v1610 = vmul.f32 %v1358, 1.442695
        %v1611 = vpow.pop %v1610
        %v1612 = vmul.f32 %v1359, 1.442695
        %v1613 = vpow.pop %v1612
        %v1614 = vmul.f32 %v1360, 1.442695
        %v1615 = vpow.pop %v1614
        %v1616 = vmul.f32 %v1361, 1.442695
        %v1617 = vpow.pop %v1616
        %v1618 = vadd.f32 %v1363, %v1367
        %v1619 = vadd.f32 %v1618, %v1371
        %v1620 = vadd.f32 %v1619, %v1375
        %v1621 = vadd.f32 %v1620, %v1379
        %v1622 = vadd.f32 %v1621, %v1383
        %v1623 = vadd.f32 %v1622, %v1387
        %v1624 = vadd.f32 %v1623, %v1391
        %v1625 = vadd.f32 %v1624, %v1395
        %v1626 = vadd.f32 %v1625, %v1399
        %v1627 = vadd.f32 %v1626, %v1403
        %v1628 = vadd.f32 %v1627, %v1407
        %v1629 = vadd.f32 %v1628, %v1411
        %v1630 = vadd.f32 %v1629, %v1415
        %v1631 = vadd.f32 %v1630, %v1419
        %v1632 = vadd.f32 %v1631, %v1423
        %v1633 = vadd.f32 %v1632, %v1427
        %v1634 = vadd.f32 %v1633, %v1431
        %v1635 = vadd.f32 %v1634, %v1435
        %v1636 = vadd.f32 %v1635, %v1439
        %v1637 = vadd.f32 %v1636, %v1443
        %v1638 = vadd.f32 %v1637, %v1447
        %v1639 = vadd.f32 %v1638, %v1451
        %v1640 = vadd.f32 %v1639, %v1455
        %v1641 = vadd.f32 %v1640, %v1459
        %v1642 = vadd.f32 %v1641, %v1463
        %v1643 = vadd.f32 %v1642, %v1467
        %v1644 = vadd.f32 %v1643, %v1471
        %v1645 = vadd.f32 %v1644, %v1475
        %v1646 = vadd.f32 %v1645, %v1479
        %v1647 = vadd.f32 %v1646, %v1483
        %v1648 = vadd.f32 %v1647, %v1487
        %v1649 = vadd.f32 %v1648, %v1491
        %v1650 = vadd.f32 %v1649, %v1495
        %v1651 = vadd.f32 %v1650, %v1499
        %v1652 = vadd.f32 %v1651, %v1503
        %v1653 = vadd.f32 %v1652, %v1507
        %v1654 = vadd.f32 %v1653, %v1511
        %v1655 = vadd.f32 %v1654, %v1515
        %v1656 = vadd.f32 %v1655, %v1519
        %v1657 = vadd.f32 %v1656, %v1523
        %v1658 = vadd.f32 %v1657, %v1527
        %v1659 = vadd.f32 %v1658, %v1531
        %v1660 = vadd.f32 %v1659, %v1535
        %v1661 = vadd.f32 %v1660, %v1539
        %v1662 = vadd.f32 %v1661, %v1543
        %v1663 = vadd.f32 %v1662, %v1547
        %v1664 = vadd.f32 %v1663, %v1551
        %v1665 = vadd.f32 %v1664, %v1555
        %v1666 = vadd.f32 %v1665, %v1559
        %v1667 = vadd.f32 %v1666, %v1563
        %v1668 = vadd.f32 %v1667, %v1567
        %v1669 = vadd.f32 %v1668, %v1571
        %v1670 = vadd.f32 %v1669, %v1575
        %v1671 = vadd.f32 %v1670, %v1579
        %v1672 = vadd.f32 %v1671, %v1583
        %v1673 = vadd.f32 %v1672, %v1587
        %v1674 = vadd.f32 %v1673, %v1591
        %v1675 = vadd.f32 %v1674, %v1595
        %v1676 = vadd.f32 %v1675, %v1599
        %v1677 = vadd.f32 %v1676, %v1603
        %v1678 = vadd.f32 %v1677, %v1607
        %v1679 = vadd.f32 %v1678, %v1611
        %v1680 = vadd.f32 %v1679, %v1615
        %v1681 = vrot.slane %v1680, 4
        %v1682 = vadd.f32 %v1680, %v1681
        %v1683 = vrot.slane %v1682, 2
        %v1684 = vadd.f32 %v1682, %v1683
        %v1685 = vrot.slane %v1684, 1
        %v1686 = vadd.f32 %v1684, %v1685
        %v1687 = vadd.f32 %v1365, %v1369
        %v1688 = vadd.f32 %v1687, %v1373
        %v1689 = vadd.f32 %v1688, %v1377
        %v1690 = vadd.f32 %v1689, %v1381
        %v1691 = vadd.f32 %v1690, %v1385
        %v1692 = vadd.f32 %v1691, %v1389
        %v1693 = vadd.f32 %v1692, %v1393
        %v1694 = vadd.f32 %v1693, %v1397
        %v1695 = vadd.f32 %v1694, %v1401
        %v1696 = vadd.f32 %v1695, %v1405
        %v1697 = vadd.f32 %v1696, %v1409
        %v1698 = vadd.f32 %v1697, %v1413
        %v1699 = vadd.f32 %v1698, %v1417
        %v1700 = vadd.f32 %v1699, %v1421
        %v1701 = vadd.f32 %v1700, %v1425
        %v1702 = vadd.f32 %v1701, %v1429
        %v1703 = vadd.f32 %v1702, %v1433
        %v1704 = vadd.f32 %v1703, %v1437
        %v1705 = vadd.f32 %v1704, %v1441
        %v1706 = vadd.f32 %v1705, %v1445
        %v1707 = vadd.f32 %v1706, %v1449
        %v1708 = vadd.f32 %v1707, %v1453
        %v1709 = vadd.f32 %v1708, %v1457
        %v1710 = vadd.f32 %v1709, %v1461
        %v1711 = vadd.f32 %v1710, %v1465
        %v1712 = vadd.f32 %v1711, %v1469
        %v1713 = vadd.f32 %v1712, %v1473
        %v1714 = vadd.f32 %v1713, %v1477
        %v1715 = vadd.f32 %v1714, %v1481
        %v1716 = vadd.f32 %v1715, %v1485
        %v1717 = vadd.f32 %v1716, %v1489
        %v1718 = vadd.f32 %v1717, %v1493
        %v1719 = vadd.f32 %v1718, %v1497
        %v1720 = vadd.f32 %v1719, %v1501
        %v1721 = vadd.f32 %v1720, %v1505
        %v1722 = vadd.f32 %v1721, %v1509
        %v1723 = vadd.f32 %v1722, %v1513
        %v1724 = vadd.f32 %v1723, %v1517
        %v1725 = vadd.f32 %v1724, %v1521
        %v1726 = vadd.f32 %v1725, %v1525
        %v1727 = vadd.f32 %v1726, %v1529
        %v1728 = vadd.f32 %v1727, %v1533
        %v1729 = vadd.f32 %v1728, %v1537
        %v1730 = vadd.f32 %v1729, %v1541
        %v1731 = vadd.f32 %v1730, %v1545
        %v1732 = vadd.f32 %v1731, %v1549
        %v1733 = vadd.f32 %v1732, %v1553
        %v1734 = vadd.f32 %v1733, %v1557
        %v1735 = vadd.f32 %v1734, %v1561
        %v1736 = vadd.f32 %v1735, %v1565
        %v1737 = vadd.f32 %v1736, %v1569
        %v1738 = vadd.f32 %v1737, %v1573
        %v1739 = vadd.f32 %v1738, %v1577
        %v1740 = vadd.f32 %v1739, %v1581
        %v1741 = vadd.f32 %v1740, %v1585
        %v1742 = vadd.f32 %v1741, %v1589
        %v1743 = vadd.f32 %v1742, %v1593
        %v1744 = vadd.f32 %v1743, %v1597
        %v1745 = vadd.f32 %v1744, %v1601
        %v1746 = vadd.f32 %v1745, %v1605
        %v1747 = vadd.f32 %v1746, %v1609
        %v1748 = vadd.f32 %v1747, %v1613
        %v1749 = vadd.f32 %v1748, %v1617
        %v1750 = vrot.slane %v1749, 4
        %v1751 = vadd.f32 %v1749, %v1750
        %v1752 = vrot.slane %v1751, 2
        %v1753 = vadd.f32 %v1751, %v1752
        %v1754 = vrot.slane %v1753, 1
        %v1755 = vadd.f32 %v1753, %v1754
        %v1756 = vrcp.pop %v1686
        %v1757 = vrcp.pop %v1755
        %v1758 = vmul.f32 %v1686, %v1756
        %v1759 = vmul.f32 %v1755, %v1757
        %v1760 = vsub.f32 2.0, %v1758
        %v1761 = vsub.f32 2.0, %v1759
        %v1762 = vmul.f32 %v1756, %v1760
        %v1763 = vmul.f32 %v1757, %v1761
        %v1764 = vmul.f32 %v1363, %v1762
        %v1765 = vmul.f32 %v1365, %v1763
        %v1766 = vmul.f32 %v1367, %v1762
        %v1767 = vmul.f32 %v1369, %v1763
        %v1768 = vmul.f32 %v1371, %v1762
        %v1769 = vmul.f32 %v1373, %v1763
        %v1770 = vmul.f32 %v1375, %v1762
        %v1771 = vmul.f32 %v1377, %v1763
        %v1772 = vmul.f32 %v1379, %v1762
        %v1773 = vmul.f32 %v1381, %v1763
        %v1774 = vmul.f32 %v1383, %v1762
        %v1775 = vmul.f32 %v1385, %v1763
        %v1776 = vmul.f32 %v1387, %v1762
        %v1777 = vmul.f32 %v1389, %v1763
        %v1778 = vmul.f32 %v1391, %v1762
        %v1779 = vmul.f32 %v1393, %v1763
        %v1780 = vmul.f32 %v1395, %v1762
        %v1781 = vmul.f32 %v1397, %v1763
        %v1782 = vmul.f32 %v1399, %v1762
        %v1783 = vmul.f32 %v1401, %v1763
        %v1784 = vmul.f32 %v1403, %v1762
        %v1785 = vmul.f32 %v1405, %v1763
        %v1786 = vmul.f32 %v1407, %v1762
        %v1787 = vmul.f32 %v1409, %v1763
        %v1788 = vmul.f32 %v1411, %v1762
        %v1789 = vmul.f32 %v1413, %v1763
        %v1790 = vmul.f32 %v1415, %v1762
        %v1791 = vmul.f32 %v1417, %v1763
        %v1792 = vmul.f32 %v1419, %v1762
        %v1793 = vmul.f32 %v1421, %v1763
        %v1794 = vmul.f32 %v1423, %v1762
        %v1795 = vmul.f32 %v1425, %v1763
        %v1796 = vmul.f32 %v1427, %v1762
        %v1797 = vmul.f32 %v1429, %v1763
        %v1798 = vmul.f32 %v1431, %v1762
        %v1799 = vmul.f32 %v1433, %v1763
        %v1800 = vmul.f32 %v1435, %v1762
        %v1801 = vmul.f32 %v1437, %v1763
        %v1802 = vmul.f32 %v1439, %v1762
        %v1803 = vmul.f32 %v1441, %v1763
        %v1804 = vmul.f32 %v1443, %v1762
        %v1805 = vmul.f32 %v1445, %v1763
        %v1806 = vmul.f32 %v1447, %v1762
        %v1807 = vmul.f32 %v1449, %v1763
        %v1808 = vmul.f32 %v1451, %v1762
        %v1809 = vmul.f32 %v1453, %v1763
        %v1810 = vmul.f32 %v1455, %v1762
        %v1811 = vmul.f32 %v1457, %v1763
        %v1812 = vmul.f32 %v1459, %v1762
        %v1813 = vmul.f32 %v1461, %v1763
        %v1814 = vmul.f32 %v1463, %v1762
        %v1815 = vmul.f32 %v1465, %v1763
        %v1816 = vmul.f32 %v1467, %v1762
        %v1817 = vmul.f32 %v1469, %v1763
        %v1818 = vmul.f32 %v1471, %v1762
        %v1819 = vmul.f32 %v1473, %v1763
        %v1820 = vmul.f32 %v1475, %v1762
        %v1821 = vmul.f32 %v1477, %v1763
        %v1822 = vmul.f32 %v1479, %v1762
        %v1823 = vmul.f32 %v1481, %v1763
        %v1824 = vmul.f32 %v1483, %v1762
        %v1825 = vmul.f32 %v1485, %v1763
        %v1826 = vmul.f32 %v1487, %v1762
        %v1827 = vmul.f32 %v1489, %v1763
        %v1828 = vmul.f32 %v1491, %v1762
        %v1829 = vmul.f32 %v1493, %v1763
        %v1830 = vmul.f32 %v1495, %v1762
        %v1831 = vmul.f32 %v1497, %v1763
        %v1832 = vmul.f32 %v1499, %v1762
        %v1833 = vmul.f32 %v1501, %v1763
        %v1834 = vmul.f32 %v1503, %v1762
        %v1835 = vmul.f32 %v1505, %v1763
        %v1836 = vmul.f32 %v1507, %v1762
        %v1837 = vmul.f32 %v1509, %v1763
        %v1838 = vmul.f32 %v1511, %v1762
        %v1839 = vmul.f32 %v1513, %v1763
        %v1840 = vmul.f32 %v1515, %v1762
        %v1841 = vmul.f32 %v1517, %v1763
        %v1842 = vmul.f32 %v1519, %v1762
        %v1843 = vmul.f32 %v1521, %v1763
        %v1844 = vmul.f32 %v1523, %v1762
        %v1845 = vmul.f32 %v1525, %v1763
        %v1846 = vmul.f32 %v1527, %v1762
        %v1847 = vmul.f32 %v1529, %v1763
        %v1848 = vmul.f32 %v1531, %v1762
        %v1849 = vmul.f32 %v1533, %v1763
        %v1850 = vmul.f32 %v1535, %v1762
        %v1851 = vmul.f32 %v1537, %v1763
        %v1852 = vmul.f32 %v1539, %v1762
        %v1853 = vmul.f32 %v1541, %v1763
        %v1854 = vmul.f32 %v1543, %v1762
        %v1855 = vmul.f32 %v1545, %v1763
        %v1856 = vmul.f32 %v1547, %v1762
        %v1857 = vmul.f32 %v1549, %v1763
        %v1858 = vmul.f32 %v1551, %v1762
        %v1859 = vmul.f32 %v1553, %v1763
        %v1860 = vmul.f32 %v1555, %v1762
        %v1861 = vmul.f32 %v1557, %v1763
        %v1862 = vmul.f32 %v1559, %v1762
        %v1863 = vmul.f32 %v1561, %v1763
        %v1864 = vmul.f32 %v1563, %v1762
        %v1865 = vmul.f32 %v1565, %v1763
        %v1866 = vmul.f32 %v1567, %v1762
        %v1867 = vmul.f32 %v1569, %v1763
        %v1868 = vmul.f32 %v1571, %v1762
        %v1869 = vmul.f32 %v1573, %v1763
        %v1870 = vmul.f32 %v1575, %v1762
        %v1871 = vmul.f32 %v1577, %v1763
        %v1872 = vmul.f32 %v1579, %v1762
        %v1873 = vmul.f32 %v1581, %v1763
        %v1874 = vmul.f32 %v1583, %v1762
        %v1875 = vmul.f32 %v1585, %v1763
        %v1876 = vmul.f32 %v1587, %v1762
        %v1877 = vmul.f32 %v1589, %v1763
        %v1878 = vmul.f32 %v1591, %v1762
        %v1879 = vmul.f32 %v1593, %v1763
        %v1880 = vmul.f32 %v1595, %v1762
        %v1881 = vmul.f32 %v1597, %v1763
        %v1882 = vmul.f32 %v1599, %v1762
        %v1883 = vmul.f32 %v1601, %v1763
        %v1884 = vmul.f32 %v1603, %v1762
        %v1885 = vmul.f32 %v1605, %v1763
        %v1886 = vmul.f32 %v1607, %v1762
        %v1887 = vmul.f32 %v1609, %v1763
        %v1888 = vmul.f32 %v1611, %v1762
        %v1889 = vmul.f32 %v1613, %v1763
        %v1890 = vmul.f32 %v1615, %v1762
        %v1891 = vmul.f32 %v1617, %v1763
        %v1892 = vsub.f32 %v1764, %v1762
        %v1893 = vsub.f32 %v1765, %v1763
        %v1894 = vsub.f32 %v1766, %v1762
        %v1895 = vsub.f32 %v1767, %v1763
        %v1896 = vsub.f32 %v1768, %v1762
        %v1897 = vsub.f32 %v1769, %v1763
        %v1898 = vsub.f32 %v1770, %v1762
        %v1899 = vsub.f32 %v1771, %v1763
        %v1900 = vsub.f32 %v1772, %v1762
        %v1901 = vsub.f32 %v1773, %v1763
        %v1902 = vsub.f32 %v1774, %v1762
        %v1903 = vsub.f32 %v1775, %v1763
        %v1904 = vsub.f32 %v1776, %v1762
        %v1905 = vsub.f32 %v1777, %v1763
        %v1906 = vsub.f32 %v1778, %v1762
        %v1907 = vsub.f32 %v1779, %v1763
        %v1908 = vsub.f32 %v1780, %v1762
        %v1909 = vsub.f32 %v1781, %v1763
        %v1910 = vsub.f32 %v1782, %v1762
        %v1911 = vsub.f32 %v1783, %v1763
        %v1912 = vsub.f32 %v1784, %v1762
        %v1913 = vsub.f32 %v1785, %v1763
        %v1914 = vsub.f32 %v1786, %v1762
        %v1915 = vsub.f32 %v1787, %v1763
        %v1916 = vsub.f32 %v1788, %v1762
        %v1917 = vsub.f32 %v1789, %v1763
        %v1918 = vsub.f32 %v1790, %v1762
        %v1919 = vsub.f32 %v1791, %v1763
        %v1920 = vsub.f32 %v1792, %v1762
        %v1921 = vsub.f32 %v1793, %v1763
        %v1922 = vsub.f32 %v1794, %v1762
        %v1923 = vsub.f32 %v1795, %v1763
        %v1924 = vsub.f32 %v1796, %v1762
        %v1925 = vsub.f32 %v1797, %v1763
        %v1926 = vsub.f32 %v1798, %v1762
        %v1927 = vsub.f32 %v1799, %v1763
        %v1928 = vsub.f32 %v1800, %v1762
        %v1929 = vsub.f32 %v1801, %v1763
        %v1930 = vsub.f32 %v1802, %v1762
        %v1931 = vsub.f32 %v1803, %v1763
        %v1932 = vsub.f32 %v1804, %v1762
        %v1933 = vsub.f32 %v1805, %v1763
        %v1934 = vsub.f32 %v1806, %v1762
        %v1935 = vsub.f32 %v1807, %v1763
        %v1936 = vsub.f32 %v1808, %v1762
        %v1937 = vsub.f32 %v1809, %v1763
        %v1938 = vsub.f32 %v1810, %v1762
        %v1939 = vsub.f32 %v1811, %v1763
        %v1940 = vsub.f32 %v1812, %v1762
        %v1941 = vsub.f32 %v1813, %v1763
        %v1942 = vsub.f32 %v1814, %v1762
        %v1943 = vsub.f32 %v1815, %v1763
        %v1944 = vsub.f32 %v1816, %v1762
        %v1945 = vsub.f32 %v1817, %v1763
        %v1946 = vsub.f32 %v1818, %v1762
        %v1947 = vsub.f32 %v1819, %v1763
        %v1948 = vsub.f32 %v1820, %v1762
        %v1949 = vsub.f32 %v1821, %v1763
        %v1950 = vsub.f32 %v1822, %v1762
        %v1951 = vsub.f32 %v1823, %v1763
        %v1952 = vsub.f32 %v1824, %v1762
        %v1953 = vsub.f32 %v1825, %v1763
        %v1954 = vsub.f32 %v1826, %v1762
        %v1955 = vsub.f32 %v1827, %v1763
        %v1956 = vsub.f32 %v1828, %v1762
        %v1957 = vsub.f32 %v1829, %v1763
        %v1958 = vsub.f32 %v1830, %v1762
        %v1959 = vsub.f32 %v1831, %v1763
        %v1960 = vsub.f32 %v1832, %v1762
        %v1961 = vsub.f32 %v1833, %v1763
        %v1962 = vsub.f32 %v1834, %v1762
        %v1963 = vsub.f32 %v1835, %v1763
        %v1964 = vsub.f32 %v1836, %v1762
        %v1965 = vsub.f32 %v1837, %v1763
        %v1966 = vsub.f32 %v1838, %v1762
        %v1967 = vsub.f32 %v1839, %v1763
        %v1968 = vsub.f32 %v1840, %v1762
        %v1969 = vsub.f32 %v1841, %v1763
        %v1970 = vsub.f32 %v1842, %v1762
        %v1971 = vsub.f32 %v1843, %v1763
        %v1972 = vsub.f32 %v1844, %v1762
        %v1973 = vsub.f32 %v1845, %v1763
        %v1974 = vsub.f32 %v1846, %v1762
        %v1975 = vsub.f32 %v1847, %v1763
        %v1976 = vsub.f32 %v1848, %v1762
        %v1977 = vsub.f32 %v1849, %v1763
        %v1978 = vsub.f32 %v1850, %v1762
        %v1979 = vsub.f32 %v1851, %v1763
        %v1980 = vsub.f32 %v1852, %v1762
        %v1981 = vsub.f32 %v1853, %v1763
        %v1982 = vsub.f32 %v1854, %v1762
        %v1983 = vsub.f32 %v1855, %v1763
        %v1984 = vsub.f32 %v1856, %v1762
        %v1985 = vsub.f32 %v1857, %v1763
        %v1986 = vsub.f32 %v1858, %v1762
        %v1987 = vsub.f32 %v1859, %v1763
        %v1988 = vsub.f32 %v1860, %v1762
        %v1989 = vsub.f32 %v1861, %v1763
        %v1990 = vsub.f32 %v1862, %v1762
        %v1991 = vsub.f32 %v1863, %v1763
        %v1992 = vsub.f32 %v1864, %v1762
        %v1993 = vsub.f32 %v1865, %v1763
        %v1994 = vsub.f32 %v1866, %v1762
        %v1995 = vsub.f32 %v1867, %v1763
        %v1996 = vsub.f32 %v1868, %v1762
        %v1997 = vsub.f32 %v1869, %v1763
        %v1998 = vsub.f32 %v1870, %v1762
        %v1999 = vsub.f32 %v1871, %v1763
        %v2000 = vsub.f32 %v1872, %v1762
        %v2001 = vsub.f32 %v1873, %v1763
        %v2002 = vsub.f32 %v1874, %v1762
        %v2003 = vsub.f32 %v1875, %v1763
        %v2004 = vsub.f32 %v1876, %v1762
        %v2005 = vsub.f32 %v1877, %v1763
        %v2006 = vsub.f32 %v1878, %v1762
        %v2007 = vsub.f32 %v1879, %v1763
        %v2008 = vsub.f32 %v1880, %v1762
        %v2009 = vsub.f32 %v1881, %v1763
        %v2010 = vsub.f32 %v1882, %v1762
        %v2011 = vsub.f32 %v1883, %v1763
        %v2012 = vsub.f32 %v1884, %v1762
        %v2013 = vsub.f32 %v1885, %v1763
        %v2014 = vsub.f32 %v1886, %v1762
        %v2015 = vsub.f32 %v1887, %v1763
        %v2016 = vsub.f32 %v1888, %v1762
        %v2017 = vsub.f32 %v1889, %v1763
        %v2018 = vsub.f32 %v1890, %v1762
        %v2019 = vsub.f32 %v1891, %v1763
        %v2020 = vmul.f32 %v1892, 1.442695
        %v2021 = vpow.pop %v2020
        %v2022 = vmul.f32 %v1893, 1.442695
        %v2023 = vpow.pop %v2022
        %v2024 = vmul.f32 %v1894, 1.442695
        %v2025 = vpow.pop %v2024
        %v2026 = vmul.f32 %v1895, 1.442695
        %v2027 = vpow.pop %v2026
        %v2028 = vmul.f32 %v1896, 1.442695
        %v2029 = vpow.pop %v2028
        %v2030 = vmul.f32 %v1897, 1.442695
        %v2031 = vpow.pop %v2030
        %v2032 = vmul.f32 %v1898, 1.442695
        %v2033 = vpow.pop %v2032
        %v2034 = vmul.f32 %v1899, 1.442695
        %v2035 = vpow.pop %v2034
        %v2036 = vmul.f32 %v1900, 1.442695
        %v2037 = vpow.pop %v2036
        %v2038 = vmul.f32 %v1901, 1.442695
        %v2039 = vpow.pop %v2038
        %v2040 = vmul.f32 %v1902, 1.442695
        %v2041 = vpow.pop %v2040
        %v2042 = vmul.f32 %v1903, 1.442695
        %v2043 = vpow.pop %v2042
        %v2044 = vmul.f32 %v1904, 1.442695
        %v2045 = vpow.pop %v2044
        %v2046 = vmul.f32 %v1905, 1.442695
        %v2047 = vpow.pop %v2046
        %v2048 = vmul.f32 %v1906, 1.442695
        %v2049 = vpow.pop %v2048
        %v2050 = vmul.f32 %v1907, 1.442695
        %v2051 = vpow.pop %v2050
        %v2052 = vmul.f32 %v1908, 1.442695
        %v2053 = vpow.pop %v2052
        %v2054 = vmul.f32 %v1909, 1.442695
        %v2055 = vpow.pop %v2054
        %v2056 = vmul.f32 %v1910, 1.442695
        %v2057 = vpow.pop %v2056
        %v2058 = vmul.f32 %v1911, 1.442695
        %v2059 = vpow.pop %v2058
        %v2060 = vmul.f32 %v1912, 1.442695
        %v2061 = vpow.pop %v2060
        %v2062 = vmul.f32 %v1913, 1.442695
        %v2063 = vpow.pop %v2062
        %v2064 = vmul.f32 %v1914, 1.442695
        %v2065 = vpow.pop %v2064
        %v2066 = vmul.f32 %v1915, 1.442695
        %v2067 = vpow.pop %v2066
        %v2068 = vmul.f32 %v1916, 1.442695
        %v2069 = vpow.pop %v2068
        %v2070 = vmul.f32 %v1917, 1.442695
        %v2071 = vpow.pop %v2070
        %v2072 = vmul.f32 %v1918, 1.442695
        %v2073 = vpow.pop %v2072
        %v2074 = vmul.f32 %v1919, 1.442695
        %v2075 = vpow.pop %v2074
        %v2076 = vmul.f32 %v1920, 1.442695
        %v2077 = vpow.pop %v2076
        %v2078 = vmul.f32 %v1921, 1.442695
        %v2079 = vpow.pop %v2078
        %v2080 = vmul.f32 %v1922, 1.442695
        %v2081 = vpow.pop %v2080
        %v2082 = vmul.f32 %v1923, 1.442695
        %v2083 = vpow.pop %v2082
        %v2084 = vmul.f32 %v1924, 1.442695
        %v2085 = vpow.pop %v2084
        %v2086 = vmul.f32 %v1925, 1.442695
        %v2087 = vpow.pop %v2086
        %v2088 = vmul.f32 %v1926, 1.442695
        %v2089 = vpow.pop %v2088
        %v2090 = vmul.f32 %v1927, 1.442695
        %v2091 = vpow.pop %v2090
        %v2092 = vmul.f32 %v1928, 1.442695
        %v2093 = vpow.pop %v2092
        %v2094 = vmul.f32 %v1929, 1.442695
        %v2095 = vpow.pop %v2094
        %v2096 = vmul.f32 %v1930, 1.442695
        %v2097 = vpow.pop %v2096
        %v2098 = vmul.f32 %v1931, 1.442695
        %v2099 = vpow.pop %v2098
        %v2100 = vmul.f32 %v1932, 1.442695
        %v2101 = vpow.pop %v2100
        %v2102 = vmul.f32 %v1933, 1.442695
        %v2103 = vpow.pop %v2102
        %v2104 = vmul.f32 %v1934, 1.442695
        %v2105 = vpow.pop %v2104
        %v2106 = vmul.f32 %v1935, 1.442695
        %v2107 = vpow.pop %v2106
        %v2108 = vmul.f32 %v1936, 1.442695
        %v2109 = vpow.pop %v2108
        %v2110 = vmul.f32 %v1937, 1.442695
        %v2111 = vpow.pop %v2110
        %v2112 = vmul.f32 %v1938, 1.442695
        %v2113 = vpow.pop %v2112
        %v2114 = vmul.f32 %v1939, 1.442695
        %v2115 = vpow.pop %v2114
        %v2116 = vmul.f32 %v1940, 1.442695
        %v2117 = vpow.pop %v2116
        %v2118 = vmul.f32 %v1941, 1.442695
        %v2119 = vpow.pop %v2118
        %v2120 = vmul.f32 %v1942, 1.442695
        %v2121 = vpow.pop %v2120
        %v2122 = vmul.f32 %v1943, 1.442695
        %v2123 = vpow.pop %v2122
        %v2124 = vmul.f32 %v1944, 1.442695
        %v2125 = vpow.pop %v2124
        %v2126 = vmul.f32 %v1945, 1.442695
        %v2127 = vpow.pop %v2126
        %v2128 = vmul.f32 %v1946, 1.442695
        %v2129 = vpow.pop %v2128
        %v2130 = vmul.f32 %v1947, 1.442695
        %v2131 = vpow.pop %v2130
        %v2132 = vmul.f32 %v1948, 1.442695
        %v2133 = vpow.pop %v2132
        %v2134 = vmul.f32 %v1949, 1.442695
        %v2135 = vpow.pop %v2134
        %v2136 = vmul.f32 %v1950, 1.442695
        %v2137 = vpow.pop %v2136
        %v2138 = vmul.f32 %v1951, 1.442695
        %v2139 = vpow.pop %v2138
        %v2140 = vmul.f32 %v1952, 1.442695
        %v2141 = vpow.pop %v2140
        %v2142 = vmul.f32 %v1953, 1.442695
        %v2143 = vpow.pop %v2142
        %v2144 = vmul.f32 %v1954, 1.442695
        %v2145 = vpow.pop %v2144
        %v2146 = vmul.f32 %v1955, 1.442695
        %v2147 = vpow.pop %v2146
        %v2148 = vmul.f32 %v1956, 1.442695
        %v2149 = vpow.pop %v2148
        %v2150 = vmul.f32 %v1957, 1.442695
        %v2151 = vpow.pop %v2150
        %v2152 = vmul.f32 %v1958, 1.442695
        %v2153 = vpow.pop %v2152
        %v2154 = vmul.f32 %v1959, 1.442695
        %v2155 = vpow.pop %v2154
        %v2156 = vmul.f32 %v1960, 1.442695
        %v2157 = vpow.pop %v2156
        %v2158 = vmul.f32 %v1961, 1.442695
        %v2159 = vpow.pop %v2158
        %v2160 = vmul.f32 %v1962, 1.442695
        %v2161 = vpow.pop %v2160
        %v2162 = vmul.f32 %v1963, 1.442695
        %v2163 = vpow.pop %v2162
        %v2164 = vmul.f32 %v1964, 1.442695
        %v2165 = vpow.pop %v2164
        %v2166 = vmul.f32 %v1965, 1.442695
        %v2167 = vpow.pop %v2166
        %v2168 = vmul.f32 %v1966, 1.442695
        %v2169 = vpow.pop %v2168
        %v2170 = vmul.f32 %v1967, 1.442695
        %v2171 = vpow.pop %v2170
        %v2172 = vmul.f32 %v1968, 1.442695
        %v2173 = vpow.pop %v2172
        %v2174 = vmul.f32 %v1969, 1.442695
        %v2175 = vpow.pop %v2174
        %v2176 = vmul.f32 %v1970, 1.442695
        %v2177 = vpow.pop %v2176
        %v2178 = vmul.f32 %v1971, 1.442695
        %v2179 = vpow.pop %v2178
        %v2180 = vmul.f32 %v1972, 1.442695
        %v2181 = vpow.pop %v2180
        %v2182 = vmul.f32 %v1973, 1.442695
        %v2183 = vpow.pop %v2182
        %v2184 = vmul.f32 %v1974, 1.442695
        %v2185 = vpow.pop %v2184
        %v2186 = vmul.f32 %v1975, 1.442695
        %v2187 = vpow.pop %v2186
        %v2188 = vmul.f32 %v1976, 1.442695
        %v2189 = vpow.pop %v2188
        %v2190 = vmul.f32 %v1977, 1.442695
        %v2191 = vpow.pop %v2190
        %v2192 = vmul.f32 %v1978, 1.442695
        %v2193 = vpow.pop %v2192
        %v2194 = vmul.f32 %v1979, 1.442695
        %v2195 = vpow.pop %v2194
        %v2196 = vmul.f32 %v1980, 1.442695
        %v2197 = vpow.pop %v2196
        %v2198 = vmul.f32 %v1981, 1.442695
        %v2199 = vpow.pop %v2198
        %v2200 = vmul.f32 %v1982, 1.442695
        %v2201 = vpow.pop %v2200
        %v2202 = vmul.f32 %v1983, 1.442695
        %v2203 = vpow.pop %v2202
        %v2204 = vmul.f32 %v1984, 1.442695
        %v2205 = vpow.pop %v2204
        %v2206 = vmul.f32 %v1985, 1.442695
        %v2207 = vpow.pop %v2206
        %v2208 = vmul.f32 %v1986, 1.442695
        %v2209 = vpow.pop %v2208
        %v2210 = vmul.f32 %v1987, 1.442695
        %v2211 = vpow.pop %v2210
        %v2212 = vmul.f32 %v1988, 1.442695
        %v2213 = vpow.pop %v2212
        %v2214 = vmul.f32 %v1989, 1.442695
        %v2215 = vpow.pop %v2214
        %v2216 = vmul.f32 %v1990, 1.442695
        %v2217 = vpow.pop %v2216
        %v2218 = vmul.f32 %v1991, 1.442695
        %v2219 = vpow.pop %v2218
        %v2220 = vmul.f32 %v1992, 1.442695
        %v2221 = vpow.pop %v2220
        %v2222 = vmul.f32 %v1993, 1.442695
        %v2223 = vpow.pop %v2222
        %v2224 = vmul.f32 %v1994, 1.442695
        %v2225 = vpow.pop %v2224
        %v2226 = vmul.f32 %v1995, 1.442695
        %v2227 = vpow.pop %v2226
        %v2228 = vmul.f32 %v1996, 1.442695
        %v2229 = vpow.pop %v2228
        %v2230 = vmul.f32 %v1997, 1.442695
        %v2231 = vpow.pop %v2230
        %v2232 = vmul.f32 %v1998, 1.442695
        %v2233 = vpow.pop %v2232
        %v2234 = vmul.f32 %v1999, 1.442695
        %v2235 = vpow.pop %v2234
        %v2236 = vmul.f32 %v2000, 1.442695
        %v2237 = vpow.pop %v2236
        %v2238 = vmul.f32 %v2001, 1.442695
        %v2239 = vpow.pop %v2238
        %v2240 = vmul.f32 %v2002, 1.442695
        %v2241 = vpow.pop %v2240
        %v2242 = vmul.f32 %v2003, 1.442695
        %v2243 = vpow.pop %v2242
        %v2244 = vmul.f32 %v2004, 1.442695
        %v2245 = vpow.pop %v2244
        %v2246 = vmul.f32 %v2005, 1.442695
        %v2247 = vpow.pop %v2246
        %v2248 = vmul.f32 %v2006, 1.442695
        %v2249 = vpow.pop %v2248
        %v2250 = vmul.f32 %v2007, 1.442695
        %v2251 = vpow.pop %v2250
        %v2252 = vmul.f32 %v2008, 1.442695
        %v2253 = vpow.pop %v2252
        %v2254 = vmul.f32 %v2009, 1.442695
        %v2255 = vpow.pop %v2254
        %v2256 = vmul.f32 %v2010, 1.442695
        %v2257 = vpow.pop %v2256
        %v2258 = vmul.f32 %v2011, 1.442695
        %v2259 = vpow.pop %v2258
        %v2260 = vmul.f32 %v2012, 1.442695
        %v2261 = vpow.pop %v2260
        %v2262 = vmul.f32 %v2013, 1.442695
        %v2263 = vpow.pop %v2262
        %v2264 = vmul.f32 %v2014, 1.442695
        %v2265 = vpow.pop %v2264
        %v2266 = vmul.f32 %v2015, 1.442695
        %v2267 = vpow.pop %v2266
        %v2268 = vmul.f32 %v2016, 1.442695
        %v2269 = vpow.pop %v2268
        %v2270 = vmul.f32 %v2017, 1.442695
        %v2271 = vpow.pop %v2270
        %v2272 = vmul.f32 %v2018, 1.442695
        %v2273 = vpow.pop %v2272
        %v2274 = vmul.f32 %v2019, 1.442695
        %v2275 = vpow.pop %v2274
        %v2276 = vadd.f32 %v2021, %v2025
        %v2277 = vadd.f32 %v2276, %v2029
        %v2278 = vadd.f32 %v2277, %v2033
        %v2279 = vadd.f32 %v2278, %v2037
        %v2280 = vadd.f32 %v2279, %v2041
        %v2281 = vadd.f32 %v2280, %v2045
        %v2282 = vadd.f32 %v2281, %v2049
        %v2283 = vadd.f32 %v2282, %v2053
        %v2284 = vadd.f32 %v2283, %v2057
        %v2285 = vadd.f32 %v2284, %v2061
        %v2286 = vadd.f32 %v2285, %v2065
        %v2287 = vadd.f32 %v2286, %v2069
        %v2288 = vadd.f32 %v2287, %v2073
        %v2289 = vadd.f32 %v2288, %v2077
        %v2290 = vadd.f32 %v2289, %v2081
        %v2291 = vadd.f32 %v2290, %v2085
        %v2292 = vadd.f32 %v2291, %v2089
        %v2293 = vadd.f32 %v2292, %v2093
        %v2294 = vadd.f32 %v2293, %v2097
        %v2295 = vadd.f32 %v2294, %v2101
        %v2296 = vadd.f32 %v2295, %v2105
        %v2297 = vadd.f32 %v2296, %v2109
        %v2298 = vadd.f32 %v2297, %v2113
        %v2299 = vadd.f32 %v2298, %v2117
        %v2300 = vadd.f32 %v2299, %v2121
        %v2301 = vadd.f32 %v2300, %v2125
        %v2302 = vadd.f32 %v2301, %v2129
        %v2303 = vadd.f32 %v2302, %v2133
        %v2304 = vadd.f32 %v2303, %v2137
        %v2305 = vadd.f32 %v2304, %v2141
        %v2306 = vadd.f32 %v2305, %v2145
        %v2307 = vadd.f32 %v2306, %v2149
        %v2308 = vadd.f32 %v2307, %v2153
        %v2309 = vadd.f32 %v2308, %v2157
        %v2310 = vadd.f32 %v2309, %v2161
        %v2311 = vadd.f32 %v2310, %v2165
        %v2312 = vadd.f32 %v2311, %v2169
        %v2313 = vadd.f32 %v2312, %v2173
        %v2314 = vadd.f32 %v2313, %v2177
        %v2315 = vadd.f32 %v2314, %v2181
        %v2316 = vadd.f32 %v2315, %v2185
        %v2317 = vadd.f32 %v2316, %v2189
        %v2318 = vadd.f32 %v2317, %v2193
        %v2319 = vadd.f32 %v2318, %v2197
        %v2320 = vadd.f32 %v2319, %v2201
        %v2321 = vadd.f32 %v2320, %v2205
        %v2322 = vadd.f32 %v2321, %v2209
        %v2323 = vadd.f32 %v2322, %v2213
        %v2324 = vadd.f32 %v2323, %v2217
        %v2325 = vadd.f32 %v2324, %v2221
        %v2326 = vadd.f32 %v2325, %v2225
        %v2327 = vadd.f32 %v2326, %v2229
        %v2328 = vadd.f32 %v2327, %v2233
        %v2329 = vadd.f32 %v2328, %v2237
        %v2330 = vadd.f32 %v2329, %v2241
        %v2331 = vadd.f32 %v2330, %v2245
        %v2332 = vadd.f32 %v2331, %v2249
        %v2333 = vadd.f32 %v2332, %v2253
        %v2334 = vadd.f32 %v2333, %v2257
        %v2335 = vadd.f32 %v2334, %v2261
        %v2336 = vadd.f32 %v2335, %v2265
        %v2337 = vadd.f32 %v2336, %v2269
        %v2338 = vadd.f32 %v2337, %v2273
        %v2339 = vrot.slane %v2338, 4
        %v2340 = vadd.f32 %v2338, %v2339
        %v2341 = vrot.slane %v2340, 2
        %v2342 = vadd.f32 %v2340, %v2341
        %v2343 = vrot.slane %v2342, 1
        %v2344 = vadd.f32 %v2342, %v2343
        %v2345 = vadd.f32 %v2023, %v2027
        %v2346 = vadd.f32 %v2345, %v2031
        %v2347 = vadd.f32 %v2346, %v2035
        %v2348 = vadd.f32 %v2347, %v2039
        %v2349 = vadd.f32 %v2348, %v2043
        %v2350 = vadd.f32 %v2349, %v2047
        %v2351 = vadd.f32 %v2350, %v2051
        %v2352 = vadd.f32 %v2351, %v2055
        %v2353 = vadd.f32 %v2352, %v2059
        %v2354 = vadd.f32 %v2353, %v2063
        %v2355 = vadd.f32 %v2354, %v2067
        %v2356 = vadd.f32 %v2355, %v2071
        %v2357 = vadd.f32 %v2356, %v2075
        %v2358 = vadd.f32 %v2357, %v2079
        %v2359 = vadd.f32 %v2358, %v2083
        %v2360 = vadd.f32 %v2359, %v2087
        %v2361 = vadd.f32 %v2360, %v2091
        %v2362 = vadd.f32 %v2361, %v2095
        %v2363 = vadd.f32 %v2362, %v2099
        %v2364 = vadd.f32 %v2363, %v2103
        %v2365 = vadd.f32 %v2364, %v2107
        %v2366 = vadd.f32 %v2365, %v2111
        %v2367 = vadd.f32 %v2366, %v2115
        %v2368 = vadd.f32 %v2367, %v2119
        %v2369 = vadd.f32 %v2368, %v2123
        %v2370 = vadd.f32 %v2369, %v2127
        %v2371 = vadd.f32 %v2370, %v2131
        %v2372 = vadd.f32 %v2371, %v2135
        %v2373 = vadd.f32 %v2372, %v2139
        %v2374 = vadd.f32 %v2373, %v2143
        %v2375 = vadd.f32 %v2374, %v2147
        %v2376 = vadd.f32 %v2375, %v2151
        %v2377 = vadd.f32 %v2376, %v2155
        %v2378 = vadd.f32 %v2377, %v2159
        %v2379 = vadd.f32 %v2378, %v2163
        %v2380 = vadd.f32 %v2379, %v2167
        %v2381 = vadd.f32 %v2380, %v2171
        %v2382 = vadd.f32 %v2381, %v2175
        %v2383 = vadd.f32 %v2382, %v2179
        %v2384 = vadd.f32 %v2383, %v2183
        %v2385 = vadd.f32 %v2384, %v2187
        %v2386 = vadd.f32 %v2385, %v2191
        %v2387 = vadd.f32 %v2386, %v2195
        %v2388 = vadd.f32 %v2387, %v2199
        %v2389 = vadd.f32 %v2388, %v2203
        %v2390 = vadd.f32 %v2389, %v2207
        %v2391 = vadd.f32 %v2390, %v2211
        %v2392 = vadd.f32 %v2391, %v2215
        %v2393 = vadd.f32 %v2392, %v2219
        %v2394 = vadd.f32 %v2393, %v2223
        %v2395 = vadd.f32 %v2394, %v2227
        %v2396 = vadd.f32 %v2395, %v2231
        %v2397 = vadd.f32 %v2396, %v2235
        %v2398 = vadd.f32 %v2397, %v2239
        %v2399 = vadd.f32 %v2398, %v2243
        %v2400 = vadd.f32 %v2399, %v2247
        %v2401 = vadd.f32 %v2400, %v2251
        %v2402 = vadd.f32 %v2401, %v2255
        %v2403 = vadd.f32 %v2402, %v2259
        %v2404 = vadd.f32 %v2403, %v2263
        %v2405 = vadd.f32 %v2404, %v2267
        %v2406 = vadd.f32 %v2405, %v2271
        %v2407 = vadd.f32 %v2406, %v2275
        %v2408 = vrot.slane %v2407, 4
        %v2409 = vadd.f32 %v2407, %v2408
        %v2410 = vrot.slane %v2409, 2
        %v2411 = vadd.f32 %v2409, %v2410
        %v2412 = vrot.slane %v2411, 1
        %v2413 = vadd.f32 %v2411, %v2412
        %v2414 = vrcp.pop %v2344
        %v2415 = vrcp.pop %v2413
        %v2416 = vmul.f32 %v2344, %v2414
        %v2417 = vmul.f32 %v2413, %v2415
        %v2418 = vsub.f32 2.0, %v2416
        %v2419 = vsub.f32 2.0, %v2417
        %v2420 = vmul.f32 %v2414, %v2418
        %v2421 = vmul.f32 %v2415, %v2419
        %v2422 = vmul.f32 %v2021, %v2420
        %v2423 = vmul.f32 %v2023, %v2421
        %v2424 = vmul.f32 %v2025, %v2420
        %v2425 = vmul.f32 %v2027, %v2421
        %v2426 = vmul.f32 %v2029, %v2420
        %v2427 = vmul.f32 %v2031, %v2421
        %v2428 = vmul.f32 %v2033, %v2420
        %v2429 = vmul.f32 %v2035, %v2421
        %v2430 = vmul.f32 %v2037, %v2420
        %v2431 = vmul.f32 %v2039, %v2421
        %v2432 = vmul.f32 %v2041, %v2420
        %v2433 = vmul.f32 %v2043, %v2421
        %v2434 = vmul.f32 %v2045, %v2420
        %v2435 = vmul.f32 %v2047, %v2421
        %v2436 = vmul.f32 %v2049, %v2420
        %v2437 = vmul.f32 %v2051, %v2421
        %v2438 = vmul.f32 %v2053, %v2420
        %v2439 = vmul.f32 %v2055, %v2421
        %v2440 = vmul.f32 %v2057, %v2420
        %v2441 = vmul.f32 %v2059, %v2421
        %v2442 = vmul.f32 %v2061, %v2420
        %v2443 = vmul.f32 %v2063, %v2421
        %v2444 = vmul.f32 %v2065, %v2420
        %v2445 = vmul.f32 %v2067, %v2421
        %v2446 = vmul.f32 %v2069, %v2420
        %v2447 = vmul.f32 %v2071, %v2421
        %v2448 = vmul.f32 %v2073, %v2420
        %v2449 = vmul.f32 %v2075, %v2421
        %v2450 = vmul.f32 %v2077, %v2420
        %v2451 = vmul.f32 %v2079, %v2421
        %v2452 = vmul.f32 %v2081, %v2420
        %v2453 = vmul.f32 %v2083, %v2421
        %v2454 = vmul.f32 %v2085, %v2420
        %v2455 = vmul.f32 %v2087, %v2421
        %v2456 = vmul.f32 %v2089, %v2420
        %v2457 = vmul.f32 %v2091, %v2421
        %v2458 = vmul.f32 %v2093, %v2420
        %v2459 = vmul.f32 %v2095, %v2421
        %v2460 = vmul.f32 %v2097, %v2420
        %v2461 = vmul.f32 %v2099, %v2421
        %v2462 = vmul.f32 %v2101, %v2420
        %v2463 = vmul.f32 %v2103, %v2421
        %v2464 = vmul.f32 %v2105, %v2420
        %v2465 = vmul.f32 %v2107, %v2421
        %v2466 = vmul.f32 %v2109, %v2420
        %v2467 = vmul.f32 %v2111, %v2421
        %v2468 = vmul.f32 %v2113, %v2420
        %v2469 = vmul.f32 %v2115, %v2421
        %v2470 = vmul.f32 %v2117, %v2420
        %v2471 = vmul.f32 %v2119, %v2421
        %v2472 = vmul.f32 %v2121, %v2420
        %v2473 = vmul.f32 %v2123, %v2421
        %v2474 = vmul.f32 %v2125, %v2420
        %v2475 = vmul.f32 %v2127, %v2421
        %v2476 = vmul.f32 %v2129, %v2420
        %v2477 = vmul.f32 %v2131, %v2421
        %v2478 = vmul.f32 %v2133, %v2420
        %v2479 = vmul.f32 %v2135, %v2421
        %v2480 = vmul.f32 %v2137, %v2420
        %v2481 = vmul.f32 %v2139, %v2421
        %v2482 = vmul.f32 %v2141, %v2420
        %v2483 = vmul.f32 %v2143, %v2421
        %v2484 = vmul.f32 %v2145, %v2420
        %v2485 = vmul.f32 %v2147, %v2421
        %v2486 = vmul.f32 %v2149, %v2420
        %v2487 = vmul.f32 %v2151, %v2421
        %v2488 = vmul.f32 %v2153, %v2420
        %v2489 = vmul.f32 %v2155, %v2421
        %v2490 = vmul.f32 %v2157, %v2420
        %v2491 = vmul.f32 %v2159, %v2421
        %v2492 = vmul.f32 %v2161, %v2420
        %v2493 = vmul.f32 %v2163, %v2421
        %v2494 = vmul.f32 %v2165, %v2420
        %v2495 = vmul.f32 %v2167, %v2421
        %v2496 = vmul.f32 %v2169, %v2420
        %v2497 = vmul.f32 %v2171, %v2421
        %v2498 = vmul.f32 %v2173, %v2420
        %v2499 = vmul.f32 %v2175, %v2421
        %v2500 = vmul.f32 %v2177, %v2420
        %v2501 = vmul.f32 %v2179, %v2421
        %v2502 = vmul.f32 %v2181, %v2420
        %v2503 = vmul.f32 %v2183, %v2421
        %v2504 = vmul.f32 %v2185, %v2420
        %v2505 = vmul.f32 %v2187, %v2421
        %v2506 = vmul.f32 %v2189, %v2420
        %v2507 = vmul.f32 %v2191, %v2421
        %v2508 = vmul.f32 %v2193, %v2420
        %v2509 = vmul.f32 %v2195, %v2421
        %v2510 = vmul.f32 %v2197, %v2420
        %v2511 = vmul.f32 %v2199, %v2421
        %v2512 = vmul.f32 %v2201, %v2420
        %v2513 = vmul.f32 %v2203, %v2421
        %v2514 = vmul.f32 %v2205, %v2420
        %v2515 = vmul.f32 %v2207, %v2421
        %v2516 = vmul.f32 %v2209, %v2420
        %v2517 = vmul.f32 %v2211, %v2421
        %v2518 = vmul.f32 %v2213, %v2420
        %v2519 = vmul.f32 %v2215, %v2421
        %v2520 = vmul.f32 %v2217, %v2420
        %v2521 = vmul.f32 %v2219, %v2421
        %v2522 = vmul.f32 %v2221, %v2420
        %v2523 = vmul.f32 %v2223, %v2421
        %v2524 = vmul.f32 %v2225, %v2420
        %v2525 = vmul.f32 %v2227, %v2421
        %v2526 = vmul.f32 %v2229, %v2420
        %v2527 = vmul.f32 %v2231, %v2421
        %v2528 = vmul.f32 %v2233, %v2420
        %v2529 = vmul.f32 %v2235, %v2421
        %v2530 = vmul.f32 %v2237, %v2420
        %v2531 = vmul.f32 %v2239, %v2421
        %v2532 = vmul.f32 %v2241, %v2420
        %v2533 = vmul.f32 %v2243, %v2421
        %v2534 = vmul.f32 %v2245, %v2420
        %v2535 = vmul.f32 %v2247, %v2421
        %v2536 = vmul.f32 %v2249, %v2420
        %v2537 = vmul.f32 %v2251, %v2421
        %v2538 = vmul.f32 %v2253, %v2420
        %v2539 = vmul.f32 %v2255, %v2421
        %v2540 = vmul.f32 %v2257, %v2420
        %v2541 = vmul.f32 %v2259, %v2421
        %v2542 = vmul.f32 %v2261, %v2420
        %v2543 = vmul.f32 %v2263, %v2421
        %v2544 = vmul.f32 %v2265, %v2420
        %v2545 = vmul.f32 %v2267, %v2421
        %v2546 = vmul.f32 %v2269, %v2420
        %v2547 = vmul.f32 %v2271, %v2421
        %v2548 = vmul.f32 %v2273, %v2420
        %v2549 = vmul.f32 %v2275, %v2421
        %2550 = vst [vmem:[%s322] sm:$0xff] %v2422
        %2551 = vst [vmem:[%s322 + $0x8] sm:$0xff] %v2423
        %2552 = vst [vmem:[%s322 + $0x10] sm:$0xff] %v2424
        %2553 = vst [vmem:[%s322 + $0x18] sm:$0xff] %v2425
        %2554 = vst [vmem:[%s322 + $0x20] sm:$0xff] %v2426
        %2555 = vst [vmem:[%s322 + $0x28] sm:$0xff] %v2427
        %2556 = vst [vmem:[%s322 + $0x30] sm:$0xff] %v2428
        %2557 = vst [vmem:[%s322 + $0x38] sm:$0xff] %v2429
        %2558 = vst [vmem:[%s322 + $0x40] sm:$0xff] %v2430
        %2559 = vst [vmem:[%s322 + $0x48] sm:$0xff] %v2431
        %2560 = vst [vmem:[%s322 + $0x50] sm:$0xff] %v2432
        %2561 = vst [vmem:[%s322 + $0x58] sm:$0xff] %v2433
        %2562 = vst [vmem:[%s322 + $0x60] sm:$0xff] %v2434
        %2563 = vst [vmem:[%s322 + $0x68] sm:$0xff] %v2435
        %2564 = vst [vmem:[%s322 + $0x70] sm:$0xff] %v2436
        %2565 = vst [vmem:[%s322 + $0x78] sm:$0xff] %v2437
        %2566 = vst [vmem:[%s322 + $0x80] sm:$0xff] %v2438
        %2567 = vst [vmem:[%s322 + $0x88] sm:$0xff] %v2439
        %2568 = vst [vmem:[%s322 + $0x90] sm:$0xff] %v2440
        %2569 = vst [vmem:[%s322 + $0x98] sm:$0xff] %v2441
        %2570 = vst [vmem:[%s322 + $0xa0] sm:$0xff] %v2442
        %2571 = vst [vmem:[%s322 + $0xa8] sm:$0xff] %v2443
        %2572 = vst [vmem:[%s322 + $0xb0] sm:$0xff] %v2444
        %2573 = vst [vmem:[%s322 + $0xb8] sm:$0xff] %v2445
        %2574 = vst [vmem:[%s322 + $0xc0] sm:$0xff] %v2446
        %2575 = vst [vmem:[%s322 + $0xc8] sm:$0xff] %v2447
        %2576 = vst [vmem:[%s322 + $0xd0] sm:$0xff] %v2448
        %2577 = vst [vmem:[%s322 + $0xd8] sm:$0xff] %v2449
        %2578 = vst [vmem:[%s322 + $0xe0] sm:$0xff] %v2450
        %2579 = vst [vmem:[%s322 + $0xe8] sm:$0xff] %v2451
        %2580 = vst [vmem:[%s322 + $0xf0] sm:$0xff] %v2452
        %2581 = vst [vmem:[%s322 + $0xf8] sm:$0xff] %v2453
        %2582 = vst [vmem:[%s322 + $0x100] sm:$0xff] %v2454
        %2583 = vst [vmem:[%s322 + $0x108] sm:$0xff] %v2455
        %2584 = vst [vmem:[%s322 + $0x110] sm:$0xff] %v2456
        %2585 = vst [vmem:[%s322 + $0x118] sm:$0xff] %v2457
        %2586 = vst [vmem:[%s322 + $0x120] sm:$0xff] %v2458
        %2587 = vst [vmem:[%s322 + $0x128] sm:$0xff] %v2459
        %2588 = vst [vmem:[%s322 + $0x130] sm:$0xff] %v2460
        %2589 = vst [vmem:[%s322 + $0x138] sm:$0xff] %v2461
        %2590 = vst [vmem:[%s322 + $0x140] sm:$0xff] %v2462
        %2591 = vst [vmem:[%s322 + $0x148] sm:$0xff] %v2463
        %2592 = vst [vmem:[%s322 + $0x150] sm:$0xff] %v2464
        %2593 = vst [vmem:[%s322 + $0x158] sm:$0xff] %v2465
        %2594 = vst [vmem:[%s322 + $0x160] sm:$0xff] %v2466
        %2595 = vst [vmem:[%s322 + $0x168] sm:$0xff] %v2467
        %2596 = vst [vmem:[%s322 + $0x170] sm:$0xff] %v2468
        %2597 = vst [vmem:[%s322 + $0x178] sm:$0xff] %v2469
        %2598 = vst [vmem:[%s322 + $0x180] sm:$0xff] %v2470
        %2599 = vst [vmem:[%s322 + $0x188] sm:$0xff] %v2471
        %2600 = vst [vmem:[%s322 + $0x190] sm:$0xff] %v2472
        %2601 = vst [vmem:[%s322 + $0x198] sm:$0xff] %v2473
        %2602 = vst [vmem:[%s322 + $0x1a0] sm:$0xff] %v2474
        %2603 = vst [vmem:[%s322 + $0x1a8] sm:$0xff] %v2475
        %2604 = vst [vmem:[%s322 + $0x1b0] sm:$0xff] %v2476
        %2605 = vst [vmem:[%s322 + $0x1b8] sm:$0xff] %v2477
        %2606 = vst [vmem:[%s322 + $0x1c0] sm:$0xff] %v2478
        %2607 = vst [vmem:[%s322 + $0x1c8] sm:$0xff] %v2479
        %2608 = vst [vmem:[%s322 + $0x1d0] sm:$0xff] %v2480
        %2609 = vst [vmem:[%s322 + $0x1d8] sm:$0xff] %v2481
        %2610 = vst [vmem:[%s322 + $0x1e0] sm:$0xff] %v2482
        %2611 = vst [vmem:[%s322 + $0x1e8] sm:$0xff] %v2483
        %2612 = vst [vmem:[%s322 + $0x1f0] sm:$0xff] %v2484
        %2613 = vst [vmem:[%s322 + $0x1f8] sm:$0xff] %v2485
        %2614 = vst [vmem:[%s322 + $0x200] sm:$0xff] %v2486
        %2615 = vst [vmem:[%s322 + $0x208] sm:$0xff] %v2487
        %2616 = vst [vmem:[%s322 + $0x210] sm:$0xff] %v2488
        %2617 = vst [vmem:[%s322 + $0x218] sm:$0xff] %v2489
        %2618 = vst [vmem:[%s322 + $0x220] sm:$0xff] %v2490
        %2619 = vst [vmem:[%s322 + $0x228] sm:$0xff] %v2491
        %2620 = vst [vmem:[%s322 + $0x230] sm:$0xff] %v2492
        %2621 = vst [vmem:[%s322 + $0x238] sm:$0xff] %v2493
        %2622 = vst [vmem:[%s322 + $0x240] sm:$0xff] %v2494
        %2623 = vst [vmem:[%s322 + $0x248] sm:$0xff] %v2495
        %2624 = vst [vmem:[%s322 + $0x250] sm:$0xff] %v2496
        %2625 = vst [vmem:[%s322 + $0x258] sm:$0xff] %v2497
        %2626 = vst [vmem:[%s322 + $0x260] sm:$0xff] %v2498
        %2627 = vst [vmem:[%s322 + $0x268] sm:$0xff] %v2499
        %2628 = vst [vmem:[%s322 + $0x270] sm:$0xff] %v2500
        %2629 = vst [vmem:[%s322 + $0x278] sm:$0xff] %v2501
        %2630 = vst [vmem:[%s322 + $0x280] sm:$0xff] %v2502
        %2631 = vst [vmem:[%s322 + $0x288] sm:$0xff] %v2503
        %2632 = vst [vmem:[%s322 + $0x290] sm:$0xff] %v2504
        %2633 = vst [vmem:[%s322 + $0x298] sm:$0xff] %v2505
        %2634 = vst [vmem:[%s322 + $0x2a0] sm:$0xff] %v2506
        %2635 = vst [vmem:[%s322 + $0x2a8] sm:$0xff] %v2507
        %2636 = vst [vmem:[%s322 + $0x2b0] sm:$0xff] %v2508
        %2637 = vst [vmem:[%s322 + $0x2b8] sm:$0xff] %v2509
        %2638 = vst [vmem:[%s322 + $0x2c0] sm:$0xff] %v2510
        %2639 = vst [vmem:[%s322 + $0x2c8] sm:$0xff] %v2511
        %2640 = vst [vmem:[%s322 + $0x2d0] sm:$0xff] %v2512
        %2641 = vst [vmem:[%s322 + $0x2d8] sm:$0xff] %v2513
        %2642 = vst [vmem:[%s322 + $0x2e0] sm:$0xff] %v2514
        %2643 = vst [vmem:[%s322 + $0x2e8] sm:$0xff] %v2515
        %2644 = vst [vmem:[%s322 + $0x2f0] sm:$0xff] %v2516
        %2645 = vst [vmem:[%s322 + $0x2f8] sm:$0xff] %v2517
        %2646 = vst [vmem:[%s322 + $0x300] sm:$0xff] %v2518
        %2647 = vst [vmem:[%s322 + $0x308] sm:$0xff] %v2519
        %2648 = vst [vmem:[%s322 + $0x310] sm:$0xff] %v2520
        %2649 = vst [vmem:[%s322 + $0x318] sm:$0xff] %v2521
        %2650 = vst [vmem:[%s322 + $0x320] sm:$0xff] %v2522
        %2651 = vst [vmem:[%s322 + $0x328] sm:$0xff] %v2523
        %2652 = vst [vmem:[%s322 + $0x330] sm:$0xff] %v2524
        %2653 = vst [vmem:[%s322 + $0x338] sm:$0xff] %v2525
        %2654 = vst [vmem:[%s322 + $0x340] sm:$0xff] %v2526
        %2655 = vst [vmem:[%s322 + $0x348] sm:$0xff] %v2527
        %2656 = vst [vmem:[%s322 + $0x350] sm:$0xff] %v2528
        %2657 = vst [vmem:[%s322 + $0x358] sm:$0xff] %v2529
        %2658 = vst [vmem:[%s322 + $0x360] sm:$0xff] %v2530
        %2659 = vst [vmem:[%s322 + $0x368] sm:$0xff] %v2531
        %2660 = vst [vmem:[%s322 + $0x370] sm:$0xff] %v2532
        %2661 = vst [vmem:[%s322 + $0x378] sm:$0xff] %v2533
        %2662 = vst [vmem:[%s322 + $0x380] sm:$0xff] %v2534
        %2663 = vst [vmem:[%s322 + $0x388] sm:$0xff] %v2535
        %2664 = vst [vmem:[%s322 + $0x390] sm:$0xff] %v2536
        %2665 = vst [vmem:[%s322 + $0x398] sm:$0xff] %v2537
        %2666 = vst [vmem:[%s322 + $0x3a0] sm:$0xff] %v2538
        %2667 = vst [vmem:[%s322 + $0x3a8] sm:$0xff] %v2539
        %2668 = vst [vmem:[%s322 + $0x3b0] sm:$0xff] %v2540
        %2669 = vst [vmem:[%s322 + $0x3b8] sm:$0xff] %v2541
        %2670 = vst [vmem:[%s322 + $0x3c0] sm:$0xff] %v2542
        %2671 = vst [vmem:[%s322 + $0x3c8] sm:$0xff] %v2543
        %2672 = vst [vmem:[%s322 + $0x3d0] sm:$0xff] %v2544
        %2673 = vst [vmem:[%s322 + $0x3d8] sm:$0xff] %v2545
        %2674 = vst [vmem:[%s322 + $0x3e0] sm:$0xff] %v2546
        %2675 = vst [vmem:[%s322 + $0x3e8] sm:$0xff] %v2547
        %2676 = vst [vmem:[%s322 + $0x3f0] sm:$0xff] %v2548
        %2677 = vst [vmem:[%s322 + $0x3f8] sm:$0xff] %v2549
        %v2678 = vld [vmem:[%s289] sm:$0xff]
        %v2679 = vld [vmem:[%s289 + $0x8] sm:$0xff]
        %v2680 = vld [vmem:[%s289 + $0x10] sm:$0xff]
        %v2681 = vld [vmem:[%s289 + $0x18] sm:$0xff]
        %v2682 = vld [vmem:[%s289 + $0x20] sm:$0xff]
        %v2683 = vld [vmem:[%s289 + $0x28] sm:$0xff]
        %v2684 = vld [vmem:[%s289 + $0x30] sm:$0xff]
        %v2685 = vld [vmem:[%s289 + $0x38] sm:$0xff]
        %v2686 = vld [vmem:[%s289 + $0x40] sm:$0xff]
        %v2687 = vld [vmem:[%s289 + $0x48] sm:$0xff]
        %v2688 = vld [vmem:[%s289 + $0x50] sm:$0xff]
        %v2689 = vld [vmem:[%s289 + $0x58] sm:$0xff]
        %v2690 = vld [vmem:[%s289 + $0x60] sm:$0xff]
        %v2691 = vld [vmem:[%s289 + $0x68] sm:$0xff]
        %v2692 = vld [vmem:[%s289 + $0x70] sm:$0xff]
        %v2693 = vld [vmem:[%s289 + $0x78] sm:$0xff]
        %2694 = vmatpush.msra.mxu0 %v2452
        %2695 = vmatpush.msra.mxu0 %v2450
        %2696 = vmatpush.msra.mxu0 %v2448
        %2697 = vmatpush.msra.mxu0 %v2446
        %2698 = vmatpush.msra.mxu0 %v2444
        %2699 = vmatpush.msra.mxu0 %v2442
        %2700 = vmatpush.msra.mxu0 %v2440
        %2701 = vmatpush.msra.mxu0 %v2438
        %2702 = vmatpush.msra.mxu0 %v2436
        %2703 = vmatpush.msra.mxu0 %v2434
        %2704 = vmatpush.msra.mxu0 %v2432
        %2705 = vmatpush.msra.mxu0 %v2430
        %2706 = vmatpush.msra.mxu0 %v2428
        %2707 = vmatpush.msra.mxu0 %v2426
        %2708 = vmatpush.msra.mxu0 %v2424
        %2709 = vmatpush.msra.mxu0 %v2422
        %2710 = vmatmul.f32.gmra.mxu0 %v2678
        %v2711 = vpop.f32.mrf.mxu0
        %v2712 = vadd.f32 0.0, %v2711
        %2713 = vmatmul.f32.gmra.mxu0 %v2682
        %v2714 = vpop.f32.mrf.mxu0
        %v2715 = vadd.f32 0.0, %v2714
        %2716 = vmatmul.f32.gmra.mxu0 %v2686
        %v2717 = vpop.f32.mrf.mxu0
        %v2718 = vadd.f32 0.0, %v2717
        %2719 = vmatmul.f32.gmra.mxu0 %v2690
        %v2720 = vpop.f32.mrf.mxu0
        %v2721 = vadd.f32 0.0, %v2720
        %2722 = vdwg.mxu0
        %2723 = vmatpush.msra.mxu0 %v2484
        %2724 = vmatpush.msra.mxu0 %v2482
        %2725 = vmatpush.msra.mxu0 %v2480
        %2726 = vmatpush.msra.mxu0 %v2478
        %2727 = vmatpush.msra.mxu0 %v2476
        %2728 = vmatpush.msra.mxu0 %v2474
        %2729 = vmatpush.msra.mxu0 %v2472
        %2730 = vmatpush.msra.mxu0 %v2470
        %2731 = vmatpush.msra.mxu0 %v2468
        %2732 = vmatpush.msra.mxu0 %v2466
        %2733 = vmatpush.msra.mxu0 %v2464
        %2734 = vmatpush.msra.mxu0 %v2462
        %2735 = vmatpush.msra.mxu0 %v2460
        %2736 = vmatpush.msra.mxu0 %v2458
        %2737 = vmatpush.msra.mxu0 %v2456
        %2738 = vmatpush.msra.mxu0 %v2454
        %2739 = vmatmul.f32.gmra.mxu0 %v2679
        %v2740 = vpop.f32.mrf.mxu0
        %v2741 = vadd.f32 %v2712, %v2740
        %2742 = vmatmul.f32.gmra.mxu0 %v2683
        %v2743 = vpop.f32.mrf.mxu0
        %v2744 = vadd.f32 %v2715, %v2743
        %2745 = vmatmul.f32.gmra.mxu0 %v2687
        %v2746 = vpop.f32.mrf.mxu0
        %v2747 = vadd.f32 %v2718, %v2746
        %2748 = vmatmul.f32.gmra.mxu0 %v2691
        %v2749 = vpop.f32.mrf.mxu0
        %v2750 = vadd.f32 %v2721, %v2749
        %2751 = vdwg.mxu0
        %2752 = vmatpush.msra.mxu0 %v2516
        %2753 = vmatpush.msra.mxu0 %v2514
        %2754 = vmatpush.msra.mxu0 %v2512
        %2755 = vmatpush.msra.mxu0 %v2510
        %2756 = vmatpush.msra.mxu0 %v2508
        %2757 = vmatpush.msra.mxu0 %v2506
        %2758 = vmatpush.msra.mxu0 %v2504
        %2759 = vmatpush.msra.mxu0 %v2502
        %2760 = vmatpush.msra.mxu0 %v2500
        %2761 = vmatpush.msra.mxu0 %v2498
        %2762 = vmatpush.msra.mxu0 %v2496
        %2763 = vmatpush.msra.mxu0 %v2494
        %2764 = vmatpush.msra.mxu0 %v2492
        %2765 = vmatpush.msra.mxu0 %v2490
        %2766 = vmatpush.msra.mxu0 %v2488
        %2767 = vmatpush.msra.mxu0 %v2486
        %2768 = vmatmul.f32.gmra.mxu0 %v2680
        %v2769 = vpop.f32.mrf.mxu0
        %v2770 = vadd.f32 %v2741, %v2769
        %2771 = vmatmul.f32.gmra.mxu0 %v2684
        %v2772 = vpop.f32.mrf.mxu0
        %v2773 = vadd.f32 %v2744, %v2772
        %2774 = vmatmul.f32.gmra.mxu0 %v2688
        %v2775 = vpop.f32.mrf.mxu0
        %v2776 = vadd.f32 %v2747, %v2775
        %2777 = vmatmul.f32.gmra.mxu0 %v2692
        %v2778 = vpop.f32.mrf.mxu0
        %v2779 = vadd.f32 %v2750, %v2778
        %2780 = vdwg.mxu0
        %2781 = vmatpush.msra.mxu0 %v2548
        %2782 = vmatpush.msra.mxu0 %v2546
        %2783 = vmatpush.msra.mxu0 %v2544
        %2784 = vmatpush.msra.mxu0 %v2542
        %2785 = vmatpush.msra.mxu0 %v2540
        %2786 = vmatpush.msra.mxu0 %v2538
        %2787 = vmatpush.msra.mxu0 %v2536
        %2788 = vmatpush.msra.mxu0 %v2534
        %2789 = vmatpush.msra.mxu0 %v2532
        %2790 = vmatpush.msra.mxu0 %v2530
        %2791 = vmatpush.msra.mxu0 %v2528
        %2792 = vmatpush.msra.mxu0 %v2526
        %2793 = vmatpush.msra.mxu0 %v2524
        %2794 = vmatpush.msra.mxu0 %v2522
        %2795 = vmatpush.msra.mxu0 %v2520
        %2796 = vmatpush.msra.mxu0 %v2518
        %2797 = vmatmul.f32.gmra.mxu0 %v2681
        %v2798 = vpop.f32.mrf.mxu0
        %v2799 = vadd.f32 %v2770, %v2798
        %2800 = vmatmul.f32.gmra.mxu0 %v2685
        %v2801 = vpop.f32.mrf.mxu0
        %v2802 = vadd.f32 %v2773, %v2801
        %2803 = vmatmul.f32.gmra.mxu0 %v2689
        %v2804 = vpop.f32.mrf.mxu0
        %v2805 = vadd.f32 %v2776, %v2804
        %2806 = vmatmul.f32.gmra.mxu0 %v2693
        %v2807 = vpop.f32.mrf.mxu0
        %v2808 = vadd.f32 %v2779, %v2807
        %2809 = vdwg.mxu0
        %2810 = vmatpush.msra.mxu0 %v2453
        %2811 = vmatpush.msra.mxu0 %v2451
        %2812 = vmatpush.msra.mxu0 %v2449
        %2813 = vmatpush.msra.mxu0 %v2447
        %2814 = vmatpush.msra.mxu0 %v2445
        %2815 = vmatpush.msra.mxu0 %v2443
        %2816 = vmatpush.msra.mxu0 %v2441
        %2817 = vmatpush.msra.mxu0 %v2439
        %2818 = vmatpush.msra.mxu0 %v2437
        %2819 = vmatpush.msra.mxu0 %v2435
        %2820 = vmatpush.msra.mxu0 %v2433
        %2821 = vmatpush.msra.mxu0 %v2431
        %2822 = vmatpush.msra.mxu0 %v2429
        %2823 = vmatpush.msra.mxu0 %v2427
        %2824 = vmatpush.msra.mxu0 %v2425
        %2825 = vmatpush.msra.mxu0 %v2423
        %2826 = vmatmul.f32.gmra.mxu0 %v2678
        %v2827 = vpop.f32.mrf.mxu0
        %v2828 = vadd.f32 0.0, %v2827
        %2829 = vmatmul.f32.gmra.mxu0 %v2682
        %v2830 = vpop.f32.mrf.mxu0
        %v2831 = vadd.f32 0.0, %v2830
        %2832 = vmatmul.f32.gmra.mxu0 %v2686
        %v2833 = vpop.f32.mrf.mxu0
        %v2834 = vadd.f32 0.0, %v2833
        %2835 = vmatmul.f32.gmra.mxu0 %v2690
        %v2836 = vpop.f32.mrf.mxu0
        %v2837 = vadd.f32 0.0, %v2836
        %2838 = vdwg.mxu0
        %2839 = vmatpush.msra.mxu0 %v2485
        %2840 = vmatpush.msra.mxu0 %v2483
        %2841 = vmatpush.msra.mxu0 %v2481
        %2842 = vmatpush.msra.mxu0 %v2479
        %2843 = vmatpush.msra.mxu0 %v2477
        %2844 = vmatpush.msra.mxu0 %v2475
        %2845 = vmatpush.msra.mxu0 %v2473
        %2846 = vmatpush.msra.mxu0 %v2471
        %2847 = vmatpush.msra.mxu0 %v2469
        %2848 = vmatpush.msra.mxu0 %v2467
        %2849 = vmatpush.msra.mxu0 %v2465
        %2850 = vmatpush.msra.mxu0 %v2463
        %2851 = vmatpush.msra.mxu0 %v2461
        %2852 = vmatpush.msra.mxu0 %v2459
        %2853 = vmatpush.msra.mxu0 %v2457
        %2854 = vmatpush.msra.mxu0 %v2455
        %2855 = vmatmul.f32.gmra.mxu0 %v2679
        %v2856 = vpop.f32.mrf.mxu0
        %v2857 = vadd.f32 %v2828, %v2856
        %2858 = vmatmul.f32.gmra.mxu0 %v2683
        %v2859 = vpop.f32.mrf.mxu0
        %v2860 = vadd.f32 %v2831, %v2859
        %2861 = vmatmul.f32.gmra.mxu0 %v2687
        %v2862 = vpop.f32.mrf.mxu0
        %v2863 = vadd.f32 %v2834, %v2862
        %2864 = vmatmul.f32.gmra.mxu0 %v2691
        %v2865 = vpop.f32.mrf.mxu0
        %v2866 = vadd.f32 %v2837, %v2865
        %2867 = vdwg.mxu0
        %2868 = vmatpush.msra.mxu0 %v2517
        %2869 = vmatpush.msra.mxu0 %v2515
        %2870 = vmatpush.msra.mxu0 %v2513
        %2871 = vmatpush.msra.mxu0 %v2511
        %2872 = vmatpush.msra.mxu0 %v2509
        %2873 = vmatpush.msra.mxu0 %v2507
        %2874 = vmatpush.msra.mxu0 %v2505
        %2875 = vmatpush.msra.mxu0 %v2503
        %2876 = vmatpush.msra.mxu0 %v2501
        %2877 = vmatpush.msra.mxu0 %v2499
        %2878 = vmatpush.msra.mxu0 %v2497
        %2879 = vmatpush.msra.mxu0 %v2495
        %2880 = vmatpush.msra.mxu0 %v2493
        %2881 = vmatpush.msra.mxu0 %v2491
        %2882 = vmatpush.msra.mxu0 %v2489
        %2883 = vmatpush.msra.mxu0 %v2487
        %2884 = vmatmul.f32.gmra.mxu0 %v2680
        %v2885 = vpop.f32.mrf.mxu0
        %v2886 = vadd.f32 %v2857, %v2885
        %2887 = vmatmul.f32.gmra.mxu0 %v2684
        %v2888 = vpop.f32.mrf.mxu0
        %v2889 = vadd.f32 %v2860, %v2888
        %2890 = vmatmul.f32.gmra.mxu0 %v2688
        %v2891 = vpop.f32.mrf.mxu0
        %v2892 = vadd.f32 %v2863, %v2891
        %2893 = vmatmul.f32.gmra.mxu0 %v2692
        %v2894 = vpop.f32.mrf.mxu0
        %v2895 = vadd.f32 %v2866, %v2894
        %2896 = vdwg.mxu0
        %2897 = vmatpush.msra.mxu0 %v2549
        %2898 = vmatpush.msra.mxu0 %v2547
        %2899 = vmatpush.msra.mxu0 %v2545
        %2900 = vmatpush.msra.mxu0 %v2543
        %2901 = vmatpush.msra.mxu0 %v2541
        %2902 = vmatpush.msra.mxu0 %v2539
        %2903 = vmatpush.msra.mxu0 %v2537
        %2904 = vmatpush.msra.mxu0 %v2535
        %2905 = vmatpush.msra.mxu0 %v2533
        %2906 = vmatpush.msra.mxu0 %v2531
        %2907 = vmatpush.msra.mxu0 %v2529
        %2908 = vmatpush.msra.mxu0 %v2527
        %2909 = vmatpush.msra.mxu0 %v2525
        %2910 = vmatpush.msra.mxu0 %v2523
        %2911 = vmatpush.msra.mxu0 %v2521
        %2912 = vmatpush.msra.mxu0 %v2519
        %2913 = vmatmul.f32.gmra.mxu0 %v2681
        %v2914 = vpop.f32.mrf.mxu0
        %v2915 = vadd.f32 %v2886, %v2914
        %2916 = vmatmul.f32.gmra.mxu0 %v2685
        %v2917 = vpop.f32.mrf.mxu0
        %v2918 = vadd.f32 %v2889, %v2917
        %2919 = vmatmul.f32.gmra.mxu0 %v2689
        %v2920 = vpop.f32.mrf.mxu0
        %v2921 = vadd.f32 %v2892, %v2920
        %2922 = vmatmul.f32.gmra.mxu0 %v2693
        %v2923 = vpop.f32.mrf.mxu0
        %v2924 = vadd.f32 %v2895, %v2923
        %2925 = vdwg.mxu0
        %2926 = vst [vmem:[%s329] sm:$0xff] %v2799
        %2927 = vst [vmem:[%s329 + $0x8] sm:$0xff] %v2915
        %2928 = vst [vmem:[%s329 + $0x10] sm:$0xff] %v2802
        %2929 = vst [vmem:[%s329 + $0x18] sm:$0xff] %v2918
        %2930 = vst [vmem:[%s329 + $0x20] sm:$0xff] %v2805
        %2931 = vst [vmem:[%s329 + $0x28] sm:$0xff] %v2921
        %2932 = vst [vmem:[%s329 + $0x30] sm:$0xff] %v2808
        %2933 = vst [vmem:[%s329 + $0x38] sm:$0xff] %v2924
        %s2934 = sand.u32 %s130, 1
        %s2935 = scalar_lea.sflag [#allocation4], %s2934
        %s2936 = sand.u32 %s130, 1
        %s2937 = smul.addr %s2936, 1024
        %s2938 = scalar_lea.vmem [#allocation8], %s2937
        %s2939 = sand.u32 %s158, 1
        %s2940 = scalar_lea.sflag [#allocation10], %s2939
        %s2941 = sand.u32 %s158, 1
        %s2942 = smul.addr %s2941, 64
        %s2943 = scalar_lea.vmem [#allocation9], %s2942
        // Predicated region
        $region45: #{tpu_custom_call.1} parent=31 // pred_check
          %p2944 = pneg %p140
        $region46: #{tpu_custom_call.1} parent=31 // pred_check_branch
          %2946 = sbr.rel (%p2944) target = $region48
        $region47: #{tpu_custom_call.1} parent=31 // pred_region
          %s2947 = smul.u32 2, %s33
          %2949 = vsyncadd %s2935, 0
          %s2950 = smul.addr %s32, 128
          %s2951 = sadd.s32 %s2947, %s2950
          %s2952 = smul.addr %s2951, 8
          %s2953 = scalar_lea.hbm %s3, %s2952
          %s2954 = sshll.u32 %s2938, 4
          %s2955 = int_to_ptr.vmem [resolvable:$true] %s2954
          %s2956 = sshll.u32 %s2953, 4
          %s2957 = int_to_ptr.hbm [resolvable:$true] %s2956
          %2962 = dma.vmem_to_hbm [thread:$0]  %s2955, 16384, %s2957, %s2935, 256, 256, 16
        $region48: #{tpu_custom_call.1} parent=31 // pred_fallthru
          _
        // Predicated region
        $region49: #{tpu_custom_call.1} parent=31 // pred_check
          %p2963 = pneg %p168
        $region50: #{tpu_custom_call.1} parent=31 // pred_check_branch
          %2965 = sbr.rel (%p2963) target = $region52
        $region51: #{tpu_custom_call.1} parent=31 // pred_region
          %s2966 = smul.u32 2, %s33
          %2968 = vsyncadd %s2940, 0
          %s2969 = smul.addr %s32, 8
          %s2970 = sadd.s32 %s2966, %s2969
          %s2971 = smul.addr %s2970, 8
          %s2972 = scalar_lea.hbm %s4, %s2971
          %s2973 = sshll.u32 %s2943, 4
          %s2974 = int_to_ptr.vmem [resolvable:$true] %s2973
          %s2975 = sshll.u32 %s2972, 4
          %s2976 = int_to_ptr.hbm [resolvable:$true] %s2975
          %2981 = dma.vmem_to_hbm [thread:$0]  %s2974, 1024, %s2976, %s2940, 256, 256, 16
        $region52: #{tpu_custom_call.1} parent=31 // pred_fallthru
          _
      $region32: #{tpu_custom_call.1} parent=5 // pred_fallthru
        _
      %p2982 = scmp.le.s32.totalorder 2, %s23
      // Predicated region
      $region53: #{tpu_custom_call.1} parent=5 // pred_check
        %p2983 = pneg %p2982
      $region54: #{tpu_custom_call.1} parent=5 // pred_check_branch
        %2985 = sbr.rel (%p2983) target = $region56
      $region55: #{tpu_custom_call.1} parent=5 // pred_region
        %s2986 = ssub.s32 %s23, 2
        // Predicated region
        $region57: #{tpu_custom_call.1} parent=55 // pred_check
          %p2987 = pneg %p146
        $region58: #{tpu_custom_call.1} parent=55 // pred_check_branch
          %2989 = sbr.rel (%p2987) target = $region60
        $region59: #{tpu_custom_call.1} parent=55 // pred_region
          %s2990 = sand.u32 %s131, 1
          %s2991 = scalar_lea.sflag [#allocation4], %s2990
          %s2992 = sand.u32 %s131, 1
          %s2993 = smul.addr %s2992, 1024
          %s2994 = scalar_lea.vmem [#allocation8], %s2993
          %2996 = dma.done %s2991, 16384
        $region60: #{tpu_custom_call.1} parent=55 // pred_fallthru
          _
        // Predicated region
        $region61: #{tpu_custom_call.1} parent=55 // pred_check
          %p2997 = pneg %p174
        $region62: #{tpu_custom_call.1} parent=55 // pred_check_branch
          %2999 = sbr.rel (%p2997) target = $region64
        $region63: #{tpu_custom_call.1} parent=55 // pred_region
          %s3000 = sand.u32 %s159, 1
          %s3001 = scalar_lea.sflag [#allocation10], %s3000
          %s3002 = sand.u32 %s159, 1
          %s3003 = smul.addr %s3002, 64
          %s3004 = scalar_lea.vmem [#allocation9], %s3003
          %3006 = dma.done %s3001, 1024
        $region64: #{tpu_custom_call.1} parent=55 // pred_fallthru
          _
      $region56: #{tpu_custom_call.1} parent=5 // pred_fallthru
        _
    $region6: #{tpu_custom_call.1} parent=1 // loop_footer
      %s27 = sadd.s32 1, %s23
    $region7: #{tpu_custom_call.1} parent=1 // loop_footer_branch
      %22 = sbr.rel target = $region3
    $region8: #{tpu_custom_call.1} parent=1 // loop_exit
      _
    %3007 = vsyncpa [#allocation3], 1
    %s3008 = scalar_lea.sflag [#allocation3], 1
    %3009 = vsyncpa %s3008, 1
    %3010 = vsyncpa [#allocation6], 1
    %s3011 = scalar_lea.sflag [#allocation6], 1
    %3012 = vsyncpa %s3011, 1
    %3013 = vsyncpa [#allocation4], 1
    %s3014 = scalar_lea.sflag [#allocation4], 1
    %3015 = vsyncpa %s3014, 1
    %3016 = vsyncpa [#allocation10], 1
    %s3017 = scalar_lea.sflag [#allocation10], 1
    %3018 = vsyncpa %s3017, 1

</llo_original>
